<compile_context>
chip_gen: v7x
topology: tpu7x:2x2x1
jax: 0.10.0
libtpu: 0.0.40
codegen_flags: <defaults>
</compile_context>

<pallas_src>
import functools

import jax
import jax.numpy as jnp
from jax import lax
from jax.experimental import pallas as pl
from jax.experimental.pallas import tpu as pltpu

LANE = 128

# Set True on v7x (2 TensorCores/chip) to shard the size-2 branch axis across cores
# (review: plain "parallel" does not change codegen; CORE_PARALLEL does). Left off by
# default so the kernel compiles unchanged on single-core v5e/v6e.
USE_CORE_PARALLEL_BRANCH_AXIS = False


def _round_up(n, m):
    return (n + m - 1) // m * m


def _choose_tiles(hw, batch, ch, x_itemsize, f_pad):
    """Byte-derived HW tile (t_hw), in-kernel lane chunk (c_hw) and vmem limit."""
    try:
        vmem_cap = int(pltpu.get_tpu_info().vmem_capacity_bytes)
        if vmem_cap <= 0:
            raise ValueError(vmem_cap)
    except Exception:
        vmem_cap = 64 * 1024 * 1024                      # v7x-conservative fallback
    vmem_limit = min(vmem_cap * 3 // 4, 100 * 1024 * 1024)

    # Keep the fused (F_pad, c_hw) f32 intermediate at <= ~32 vregs (128 KiB).
    c_hw = 256 if f_pad * 256 * 4 <= 256 * 1024 else 128
    if hw < c_hw:
        return hw, hw, vmem_limit                        # single tiny block == full extent

    x_budget = vmem_limit // 2                           # streamed-x share of VMEM
    per_lane = 2 * batch * ch * x_itemsize               # 2 pipeline buffers per lane of t_hw
    t = min(x_budget // per_lane, hw)
    t = max(c_hw, (t // c_hw) * c_hw)                    # multiple of the in-kernel chunk
    return t, c_hw, vmem_limit


def _two_branch_kernel(x_ref, ewt_ref, eb_ref, pwt_ref, pb_ref, h_ref, p_ref, *,
                       hw, t_hw, c_hw, batch, unroll_batch):
    # Per grid step (branch, k):
    #   x_ref   : (1, B, C, t_hw)     bf16 input tile, HW on lanes (lane-dense loads)
    #   ewt_ref : (1, F_pad, C)       bf16 encoder weight (transposed, zero-padded)
    #   eb_ref  : (1, F_pad, 1)       f32 encoder bias column
    #   pwt_ref : (1, F_pad, P_pad)   f32 projection weight (natural orientation)
    #   pb_ref  : (1, 1, P_pad)       f32 projection bias row
    #   h_ref   : (1, B, F_pad)       f32 pooled features; ALSO the GAP accumulator
    #                                 (resident across the k axis -> no extra scratch)
    #   p_ref   : (1, B, P_pad)       f32 projection, written at the last k step
    k = pl.program_id(1)
    n_k = pl.num_programs(1)
    n_chunks = t_hw // c_hw
    need_mask = (hw % t_hw) != 0                          # static: tail tile exists
    f_pad = ewt_ref.shape[1]

    @pl.when(k == 0)
    def _init():
        h_ref[...] = jnp.zeros_like(h_ref)

    ew = ewt_ref[0]                                       # (F_pad, C) bf16, tiny
    eb = eb_ref[0]                                        # (F_pad, 1) f32 bias column
    col0 = k * t_hw                                       # global HW offset of this tile

    def accumulate_batch(b):
        """GAP numerator for batch element b over this HW tile, chunked along lanes."""
        def chunk_body(j, acc_vec):
            off = j * c_hw
            if c_hw % LANE == 0:
                off = pl.multiple_of(off, LANE)
            xc = x_ref[0, b, :, pl.ds(off, c_hw)]                        # (C, c_hw) bf16
            f = jnp.dot(ew, xc, preferred_element_type=jnp.float32)      # (F_pad, c_hw) f32
            f = jnp.maximum(f + eb, 0.0)                                 # 1x1 conv bias + ReLU
            if need_mask:
                # Mask columns past HW (partial tail tile) AFTER the ReLU so garbage /
                # ReLU(bias) never pollutes the mean.
                col = col0 + off + lax.broadcasted_iota(jnp.int32, (1, c_hw), 1)
                f = jnp.where(col < hw, f, 0.0)
            return acc_vec + jnp.sum(f, axis=1)                          # (F_pad,)

        acc = lax.fori_loop(0, n_chunks, chunk_body,
                            jnp.zeros((f_pad,), jnp.float32),
                            unroll=(n_chunks <= 8))
        # Lane-dense single-row read-modify-write into the resident output block.
        h_ref[0, b, :] = h_ref[0, b, :] + acc

    if unroll_batch:                       # small B: static unroll (concrete indices)
        for b in range(batch):
            accumulate_batch(b)
    else:                                  # large B: bounded code size / live ranges
        def batch_body(b, carry):
            accumulate_batch(b)
            return carry
        lax.fori_loop(0, batch, batch_body, 0)

    @pl.when(k == n_k - 1)
    def _finalize():
        h_rows = h_ref[0] * (1.0 / hw)                    # global average pool
        h_ref[0] = h_rows                                  # (B, F_pad), lane-dense
        # Projection head: ReLU(h @ W + b), f32 on the MXU (tiny).
        z = jnp.dot(h_rows, pwt_ref[0], preferred_element_type=jnp.float32)   # (B, P_pad)
        p_ref[0] = jnp.maximum(z + pb_ref[0], 0.0)


def two_branch_forward(params, s_1, s_2, branch_type="separate"):
    B, C, H, W = s_1.shape
    HW = H * W

    if branch_type == "separate":
        enc_w = (params["enc_s1_w"], params["enc_s2_w"])
        enc_b = (params["enc_s1_b"], params["enc_s2_b"])
    elif branch_type == "joint":
        enc_w = (params["enc_joint_w"],)                  # single block -> never DMA'd twice
        enc_b = (params["enc_joint_b"],)
    else:
        raise ValueError(branch_type)

    F = enc_w[0].shape[1]
    P = params["proj_s1_w"].shape[1]
    F_pad = _round_up(F, LANE)
    P_pad = _round_up(P, LANE)

    # x stays channel-major: (branch, B, C, HW) is a pure reshape + stack (no NCHW->NHWC
    # transpose); bf16 is MXU-native and halves HBM bytes for the only large operand.
    x = jnp.stack([s_1.reshape(B, C, HW), s_2.reshape(B, C, HW)],
                  axis=0).astype(jnp.bfloat16)

    # Encoder weights transposed to (F_pad, C) bf16; padded rows give ReLU(0)=0 features
    # which the zero-padded projection rows ignore (exact). Bias column stays f32.
    ewt = jnp.stack([w.T for w in enc_w], axis=0)
    ewt = jnp.pad(ewt, ((0, 0), (0, F_pad - F), (0, 0))).astype(jnp.bfloat16)
    eb = jnp.stack([b.reshape(F, 1) for b in enc_b], axis=0)
    eb = jnp.pad(eb, ((0, 0), (0, F_pad - F), (0, 0)))
    n_enc = ewt.shape[0]

    # Projection heads in natural (F_pad, P_pad) orientation (no transpose), f32.
    pwt = jnp.stack([params["proj_s1_w"], params["proj_s2_w"]], axis=0)
    pwt = jnp.pad(pwt, ((0, 0), (0, F_pad - F), (0, P_pad - P)))
    pb = jnp.stack([params["proj_s1_b"].reshape(1, P),
                    params["proj_s2_b"].reshape(1, P)], axis=0)
    pb = jnp.pad(pb, ((0, 0), (0, 0), (0, P_pad - P)))

    t_hw, c_hw, vmem_limit = _choose_tiles(HW, B, C, x.dtype.itemsize, F_pad)
    n_k = (HW + t_hw - 1) // t_hw                          # cdiv grid; tail masked in-kernel

    if n_enc == 1:
        enc_idx = lambda br, k: (0, 0, 0)                  # joint: same block for both branches
    else:
        enc_idx = lambda br, k: (br, 0, 0)

    # k-invariant projection weights: single-buffer them when large (saves VMEM, review #8).
    proj_idx = lambda br, k: (br, 0, 0)
    if pwt.size * pwt.dtype.itemsize >= (4 << 20):
        pwt_spec = pl.BlockSpec((1, F_pad, P_pad), proj_idx, pipeline_mode=pl.Buffered(1))
    else:
        pwt_spec = pl.BlockSpec((1, F_pad, P_pad), proj_idx)

    kernel = functools.partial(_two_branch_kernel, hw=HW, t_hw=t_hw, c_hw=c_hw,
                               batch=B, unroll_batch=(B <= 8))

    branch_sem = pltpu.CORE_PARALLEL if USE_CORE_PARALLEL_BRANCH_AXIS else "parallel"

    h, p = pl.pallas_call(
        kernel,
        out_shape=(jax.ShapeDtypeStruct((2, B, F_pad), jnp.float32),
                   jax.ShapeDtypeStruct((2, B, P_pad), jnp.float32)),
        grid_spec=pltpu.PrefetchScalarGridSpec(
            num_scalar_prefetch=0,
            grid=(2, n_k),                                 # (branch, HW-reduction)
            in_specs=[
                # only x is streamed along k (default double-buffered; consider
                # pl.Buffered(3) on v7x if the profile shows exposed copy time)
                pl.BlockSpec((1, B, C, t_hw), lambda br, k: (br, 0, 0, k)),
                pl.BlockSpec((1, F_pad, C), enc_idx),
                pl.BlockSpec((1, F_pad, 1), enc_idx),
                pwt_spec,
                pl.BlockSpec((1, 1, P_pad), proj_idx),
            ],
            out_specs=(
                pl.BlockSpec((1, B, F_pad), lambda br, k: (br, 0, 0)),
                pl.BlockSpec((1, B, P_pad), lambda br, k: (br, 0, 0)),
            ),
        ),
        compiler_params=pltpu.CompilerParams(
            dimension_semantics=(branch_sem, "arbitrary"),
            vmem_limit_bytes=vmem_limit,
        ),
    )(x, ewt, eb, pwt, pb)

    # Lane-dense outputs: only un-pad, no transpose.
    h_i = h[0, :, :F]
    h_j = h[1, :, :F]
    projection_i = p[0, :, :P]
    projection_j = p[1, :, :P]
    return h_i, h_j, projection_i, projection_j


def init_params(key, bands, n_features, projection_dim):
    ks = jax.random.split(key, 8)

    def lin(kw, kb, fan_in, fan_out):
        bound = 1.0 / jnp.sqrt(fan_in)
        w = jax.random.uniform(kw, (fan_in, fan_out), jnp.float32, -bound, bound)
        b = jax.random.uniform(kb, (1, fan_out), jnp.float32, -bound, bound)
        return w, b

    enc_s1_w, enc_s1_b = lin(ks[0], ks[1], bands, n_features)
    enc_s2_w, enc_s2_b = lin(ks[2], ks[3], bands, n_features)
    proj_s1_w, proj_s1_b = lin(ks[4], ks[5], n_features, projection_dim)
    proj_s2_w, proj_s2_b = lin(ks[6], ks[7], n_features, projection_dim)
    return {
        "enc_s1_w": enc_s1_w, "enc_s1_b": enc_s1_b,
        "enc_s2_w": enc_s2_w, "enc_s2_b": enc_s2_b,
        "enc_joint_w": enc_s1_w, "enc_joint_b": enc_s1_b,
        "proj_s1_w": proj_s1_w, "proj_s1_b": proj_s1_b,
        "proj_s2_w": proj_s2_w, "proj_s2_b": proj_s2_b,
    }


# plain-JAX f32 reference for sanity checking
def _reference(params, s_1, s_2, branch_type="separate"):
    def enc(x, w, b):
        B, C, H, W = x.shape
        xr = jnp.transpose(x, (0, 2, 3, 1)).reshape(B, H * W, C)
        f = jnp.maximum(jnp.einsum("bhc,cf->bhf", xr, w) + b[None], 0.0)
        return jnp.mean(f, axis=1)

    def proj(h, w, b):
        return jnp.maximum(h @ w + b, 0.0)

    if branch_type == "separate":
        h_i = enc(s_1, params["enc_s1_w"], params["enc_s1_b"])
        h_j = enc(s_2, params["enc_s2_w"], params["enc_s2_b"])
    else:
        h_i = enc(s_1, params["enc_joint_w"], params["enc_joint_b"])
        h_j = enc(s_2, params["enc_joint_w"], params["enc_joint_b"])
    return (h_i, h_j,
            proj(h_i, params["proj_s1_w"], params["proj_s1_b"]),
            proj(h_j, params["proj_s2_w"], params["proj_s2_b"]))


if __name__ == "__main__":
    batch, bands = 2, 4
    n_features, projection_dim = 32, 16

    key = jax.random.PRNGKey(0)
    k_p, k_s1, k_s2 = jax.random.split(key, 3)
    params = init_params(k_p, bands, n_features, projection_dim)

    fwd = jax.jit(two_branch_forward, static_argnames=("branch_type",))

    # spatial=32 -> HW=1024 (128-divisible, no tail masking)
    # spatial=30 -> HW=900  (exercises the cdiv grid + in-kernel tail-masking path)
    for spatial in (32, 30):
        s_1 = jax.random.normal(k_s1, (batch, bands, spatial, spatial), jnp.float32)
        s_2 = jax.random.normal(k_s2, (batch, bands, spatial, spatial), jnp.float32)
        for btype in ("separate", "joint"):
            outs = fwd(params, s_1, s_2, branch_type=btype)
            jax.block_until_ready(outs)
            refs = _reference(params, s_1, s_2, branch_type=btype)
            for got, want in zip(outs, refs):
                assert got.shape == want.shape, (got.shape, want.shape)
                err = float(jnp.max(jnp.abs(got - want)))
                # bf16 x / encoder weights with f32 accumulation -> loosen vs. pure f32 ref.
                assert jnp.allclose(got, want, atol=5e-3, rtol=5e-3), (spatial, btype, err)

    print("KERNEL_OK")
</pallas_src>

<mosaic_0001>
module attributes {stable_mosaic.version = 11 : i64} {
  func.func @_two_branch_kernel(%arg0: i32, %arg1: i32, %arg2: memref<1x2x4x1024xbf16, #tpu.memory_space<vmem>>, %arg3: memref<1x128x4xbf16, #tpu.memory_space<vmem>>, %arg4: memref<1x128x1xf32, #tpu.memory_space<vmem>>, %arg5: memref<1x128x128xf32, #tpu.memory_space<vmem>>, %arg6: memref<1x1x128xf32, #tpu.memory_space<vmem>>, %arg7: memref<1x2x128xf32, #tpu.memory_space<vmem>>, %arg8: memref<1x2x128xf32, #tpu.memory_space<vmem>>) attributes {dimension_semantics = [#tpu.dimension_semantics<parallel>, #tpu.dimension_semantics<arbitrary>], iteration_bounds = array<i64: 2, 1>, scalar_prefetch = 0 : i64, scratch_operands = 0 : i64, tpu.core_type = #tpu.core_type<tc>, window_params = [{transform_indices = @transform_0, window_bounds = array<i64: 1, 2, 4, 1024>}, {transform_indices = @transform_1, window_bounds = array<i64: 1, 128, 4>}, {transform_indices = @transform_2, window_bounds = array<i64: 1, 128, 1>}, {transform_indices = @transform_3, window_bounds = array<i64: 1, 128, 128>}, {transform_indices = @transform_4, window_bounds = array<i64: 1, 1, 128>}, {transform_indices = @transform_5, window_bounds = array<i64: 1, 2, 128>}, {transform_indices = @transform_6, window_bounds = array<i64: 1, 2, 128>}]} {
    %c0_i32 = arith.constant 0 : i32
    %0 = arith.cmpi eq, %arg1, %c0_i32 : i32
    %1 = arith.extui %0 : i1 to i32
    %c0_i32_0 = arith.constant 0 : i32
    %2 = arith.cmpi ne, %1, %c0_i32_0 : i32
    scf.if %2 {
      %cst_81 = arith.constant 0.000000e+00 : f32
      %120 = vector.broadcast %cst_81 : f32 to vector<1x2x128xf32>
      %c0_82 = arith.constant 0 : index
      %c0_83 = arith.constant 0 : index
      %c0_84 = arith.constant 0 : index
      %121 = vector.load %arg7[%c0_82, %c0_83, %c0_84] : memref<1x2x128xf32, #tpu.memory_space<vmem>>, vector<1x2x128xf32>
      tpu.vector_store %arg7[%c0_82, %c0_83, %c0_84], %120 {strides = array<i32>} : memref<1x2x128xf32, #tpu.memory_space<vmem>>, vector<1x2x128xf32>,
    } else {
    }
    %c0 = arith.constant 0 : index
    %c0_1 = arith.constant 0 : index
    %c0_2 = arith.constant 0 : index
    %3 = vector.load %arg3[%c0, %c0_1, %c0_2] : memref<1x128x4xbf16, #tpu.memory_space<vmem>>, vector<1x128x4xbf16>
    %4 = vector.shape_cast %3 : vector<1x128x4xbf16> to vector<128x4xbf16>
    %c0_3 = arith.constant 0 : index
    %c0_4 = arith.constant 0 : index
    %c0_5 = arith.constant 0 : index
    %5 = vector.load %arg4[%c0_3, %c0_4, %c0_5] : memref<1x128x1xf32, #tpu.memory_space<vmem>>, vector<1x128x1xf32>
    %6 = vector.shape_cast %5 : vector<1x128x1xf32> to vector<128x1xf32>
    %cst = arith.constant 0.000000e+00 : f32
    %7 = vector.broadcast %cst : f32 to vector<128xf32>
    %c0_i32_6 = arith.constant 0 : i32
    %c256_i32 = arith.constant 256 : i32
    %8 = arith.muli %c0_i32_6, %c256_i32 : i32
    %9 = tpu.assume_multiple %8, 128 : i32
    %c0_7 = arith.constant 0 : index
    %c0_8 = arith.constant 0 : index
    %c0_9 = arith.constant 0 : index
    %10 = arith.index_cast %9 : i32 to index
    %11 = vector.load %arg2[%c0_7, %c0_8, %c0_9, %10] : memref<1x2x4x1024xbf16, #tpu.memory_space<vmem>>, vector<1x1x4x256xbf16>
    %12 = vector.shape_cast %11 : vector<1x1x4x256xbf16> to vector<4x256xbf16>
    %cst_10 = arith.constant dense<0.000000e+00> : vector<128x256xf32>
    %13 = tpu.matmul %4, %12, %cst_10 {dimension_numbers = #tpu.dot_dimension_numbers<[1], [0], [0], [1], [0, 0, 1, 1], [], []>} : vector<128x4xbf16>, vector<4x256xbf16>, vector<128x256xf32> -> vector<128x256xf32>
    %14 = vector.broadcast %6 : vector<128x1xf32> to vector<128x256xf32>
    %15 = arith.addf %13, %14 : vector<128x256xf32>
    %cst_11 = arith.constant 0.000000e+00 : f32
    %16 = vector.broadcast %cst_11 : f32 to vector<128x256xf32>
    %17 = arith.maximumf %15, %16 : vector<128x256xf32>
    %cst_12 = arith.constant dense<0.000000e+00> : vector<128xf32>
    %18 = vector.multi_reduction <add>, %17, %cst_12 [1] : vector<128x256xf32> to vector<128xf32>
    %19 = arith.addf %7, %18 : vector<128xf32>
    %c1_i32 = arith.constant 1 : i32
    %c256_i32_13 = arith.constant 256 : i32
    %20 = arith.muli %c1_i32, %c256_i32_13 : i32
    %21 = tpu.assume_multiple %20, 128 : i32
    %c0_14 = arith.constant 0 : index
    %c0_15 = arith.constant 0 : index
    %c0_16 = arith.constant 0 : index
    %22 = arith.index_cast %21 : i32 to index
    %23 = vector.load %arg2[%c0_14, %c0_15, %c0_16, %22] : memref<1x2x4x1024xbf16, #tpu.memory_space<vmem>>, vector<1x1x4x256xbf16>
    %24 = vector.shape_cast %23 : vector<1x1x4x256xbf16> to vector<4x256xbf16>
    %cst_17 = arith.constant dense<0.000000e+00> : vector<128x256xf32>
    %25 = tpu.matmul %4, %24, %cst_17 {dimension_numbers = #tpu.dot_dimension_numbers<[1], [0], [0], [1], [0, 0, 1, 1], [], []>} : vector<128x4xbf16>, vector<4x256xbf16>, vector<128x256xf32> -> vector<128x256xf32>
    %26 = vector.broadcast %6 : vector<128x1xf32> to vector<128x256xf32>
    %27 = arith.addf %25, %26 : vector<128x256xf32>
    %cst_18 = arith.constant 0.000000e+00 : f32
    %28 = vector.broadcast %cst_18 : f32 to vector<128x256xf32>
    %29 = arith.maximumf %27, %28 : vector<128x256xf32>
    %cst_19 = arith.constant dense<0.000000e+00> : vector<128xf32>
    %30 = vector.multi_reduction <add>, %29, %cst_19 [1] : vector<128x256xf32> to vector<128xf32>
    %31 = arith.addf %19, %30 : vector<128xf32>
    %c2_i32 = arith.constant 2 : i32
    %c256_i32_20 = arith.constant 256 : i32
    %32 = arith.muli %c2_i32, %c256_i32_20 : i32
    %33 = tpu.assume_multiple %32, 128 : i32
    %c0_21 = arith.constant 0 : index
    %c0_22 = arith.constant 0 : index
    %c0_23 = arith.constant 0 : index
    %34 = arith.index_cast %33 : i32 to index
    %35 = vector.load %arg2[%c0_21, %c0_22, %c0_23, %34] : memref<1x2x4x1024xbf16, #tpu.memory_space<vmem>>, vector<1x1x4x256xbf16>
    %36 = vector.shape_cast %35 : vector<1x1x4x256xbf16> to vector<4x256xbf16>
    %cst_24 = arith.constant dense<0.000000e+00> : vector<128x256xf32>
    %37 = tpu.matmul %4, %36, %cst_24 {dimension_numbers = #tpu.dot_dimension_numbers<[1], [0], [0], [1], [0, 0, 1, 1], [], []>} : vector<128x4xbf16>, vector<4x256xbf16>, vector<128x256xf32> -> vector<128x256xf32>
    %38 = vector.broadcast %6 : vector<128x1xf32> to vector<128x256xf32>
    %39 = arith.addf %37, %38 : vector<128x256xf32>
    %cst_25 = arith.constant 0.000000e+00 : f32
    %40 = vector.broadcast %cst_25 : f32 to vector<128x256xf32>
    %41 = arith.maximumf %39, %40 : vector<128x256xf32>
    %cst_26 = arith.constant dense<0.000000e+00> : vector<128xf32>
    %42 = vector.multi_reduction <add>, %41, %cst_26 [1] : vector<128x256xf32> to vector<128xf32>
    %43 = arith.addf %31, %42 : vector<128xf32>
    %c3_i32 = arith.constant 3 : i32
    %c256_i32_27 = arith.constant 256 : i32
    %44 = arith.muli %c3_i32, %c256_i32_27 : i32
    %45 = tpu.assume_multiple %44, 128 : i32
    %c0_28 = arith.constant 0 : index
    %c0_29 = arith.constant 0 : index
    %c0_30 = arith.constant 0 : index
    %46 = arith.index_cast %45 : i32 to index
    %47 = vector.load %arg2[%c0_28, %c0_29, %c0_30, %46] : memref<1x2x4x1024xbf16, #tpu.memory_space<vmem>>, vector<1x1x4x256xbf16>
    %48 = vector.shape_cast %47 : vector<1x1x4x256xbf16> to vector<4x256xbf16>
    %cst_31 = arith.constant dense<0.000000e+00> : vector<128x256xf32>
    %49 = tpu.matmul %4, %48, %cst_31 {dimension_numbers = #tpu.dot_dimension_numbers<[1], [0], [0], [1], [0, 0, 1, 1], [], []>} : vector<128x4xbf16>, vector<4x256xbf16>, vector<128x256xf32> -> vector<128x256xf32>
    %50 = vector.broadcast %6 : vector<128x1xf32> to vector<128x256xf32>
    %51 = arith.addf %49, %50 : vector<128x256xf32>
    %cst_32 = arith.constant 0.000000e+00 : f32
    %52 = vector.broadcast %cst_32 : f32 to vector<128x256xf32>
    %53 = arith.maximumf %51, %52 : vector<128x256xf32>
    %cst_33 = arith.constant dense<0.000000e+00> : vector<128xf32>
    %54 = vector.multi_reduction <add>, %53, %cst_33 [1] : vector<128x256xf32> to vector<128xf32>
    %55 = arith.addf %43, %54 : vector<128xf32>
    %c4_i32 = arith.constant 4 : i32
    %c0_34 = arith.constant 0 : index
    %c0_35 = arith.constant 0 : index
    %c0_36 = arith.constant 0 : index
    %56 = vector.load %arg7[%c0_34, %c0_35, %c0_36] : memref<1x2x128xf32, #tpu.memory_space<vmem>>, vector<1x1x128xf32>
    %57 = vector.shape_cast %56 : vector<1x1x128xf32> to vector<128xf32>
    %58 = arith.addf %57, %55 : vector<128xf32>
    %c0_37 = arith.constant 0 : index
    %c0_38 = arith.constant 0 : index
    %c0_39 = arith.constant 0 : index
    %59 = vector.load %arg7[%c0_37, %c0_38, %c0_39] : memref<1x2x128xf32, #tpu.memory_space<vmem>>, vector<1x1x128xf32>
    %60 = vector.shape_cast %59 : vector<1x1x128xf32> to vector<128xf32>
    %61 = vector.shape_cast %58 : vector<128xf32> to vector<1x1x128xf32>
    tpu.vector_store %arg7[%c0_37, %c0_38, %c0_39], %61 {strides = array<i32>} : memref<1x2x128xf32, #tpu.memory_space<vmem>>, vector<1x1x128xf32>,
    %cst_40 = arith.constant 0.000000e+00 : f32
    %62 = vector.broadcast %cst_40 : f32 to vector<128xf32>
    %c0_i32_41 = arith.constant 0 : i32
    %c256_i32_42 = arith.constant 256 : i32
    %63 = arith.muli %c0_i32_41, %c256_i32_42 : i32
    %64 = tpu.assume_multiple %63, 128 : i32
    %c0_43 = arith.constant 0 : index
    %c1 = arith.constant 1 : index
    %c0_44 = arith.constant 0 : index
    %65 = arith.index_cast %64 : i32 to index
    %66 = vector.load %arg2[%c0_43, %c1, %c0_44, %65] : memref<1x2x4x1024xbf16, #tpu.memory_space<vmem>>, vector<1x1x4x256xbf16>
    %67 = vector.shape_cast %66 : vector<1x1x4x256xbf16> to vector<4x256xbf16>
    %cst_45 = arith.constant dense<0.000000e+00> : vector<128x256xf32>
    %68 = tpu.matmul %4, %67, %cst_45 {dimension_numbers = #tpu.dot_dimension_numbers<[1], [0], [0], [1], [0, 0, 1, 1], [], []>} : vector<128x4xbf16>, vector<4x256xbf16>, vector<128x256xf32> -> vector<128x256xf32>
    %69 = vector.broadcast %6 : vector<128x1xf32> to vector<128x256xf32>
    %70 = arith.addf %68, %69 : vector<128x256xf32>
    %cst_46 = arith.constant 0.000000e+00 : f32
    %71 = vector.broadcast %cst_46 : f32 to vector<128x256xf32>
    %72 = arith.maximumf %70, %71 : vector<128x256xf32>
    %cst_47 = arith.constant dense<0.000000e+00> : vector<128xf32>
    %73 = vector.multi_reduction <add>, %72, %cst_47 [1] : vector<128x256xf32> to vector<128xf32>
    %74 = arith.addf %62, %73 : vector<128xf32>
    %c1_i32_48 = arith.constant 1 : i32
    %c256_i32_49 = arith.constant 256 : i32
    %75 = arith.muli %c1_i32_48, %c256_i32_49 : i32
    %76 = tpu.assume_multiple %75, 128 : i32
    %c0_50 = arith.constant 0 : index
    %c1_51 = arith.constant 1 : index
    %c0_52 = arith.constant 0 : index
    %77 = arith.index_cast %76 : i32 to index
    %78 = vector.load %arg2[%c0_50, %c1_51, %c0_52, %77] : memref<1x2x4x1024xbf16, #tpu.memory_space<vmem>>, vector<1x1x4x256xbf16>
    %79 = vector.shape_cast %78 : vector<1x1x4x256xbf16> to vector<4x256xbf16>
    %cst_53 = arith.constant dense<0.000000e+00> : vector<128x256xf32>
    %80 = tpu.matmul %4, %79, %cst_53 {dimension_numbers = #tpu.dot_dimension_numbers<[1], [0], [0], [1], [0, 0, 1, 1], [], []>} : vector<128x4xbf16>, vector<4x256xbf16>, vector<128x256xf32> -> vector<128x256xf32>
    %81 = vector.broadcast %6 : vector<128x1xf32> to vector<128x256xf32>
    %82 = arith.addf %80, %81 : vector<128x256xf32>
    %cst_54 = arith.constant 0.000000e+00 : f32
    %83 = vector.broadcast %cst_54 : f32 to vector<128x256xf32>
    %84 = arith.maximumf %82, %83 : vector<128x256xf32>
    %cst_55 = arith.constant dense<0.000000e+00> : vector<128xf32>
    %85 = vector.multi_reduction <add>, %84, %cst_55 [1] : vector<128x256xf32> to vector<128xf32>
    %86 = arith.addf %74, %85 : vector<128xf32>
    %c2_i32_56 = arith.constant 2 : i32
    %c256_i32_57 = arith.constant 256 : i32
    %87 = arith.muli %c2_i32_56, %c256_i32_57 : i32
    %88 = tpu.assume_multiple %87, 128 : i32
    %c0_58 = arith.constant 0 : index
    %c1_59 = arith.constant 1 : index
    %c0_60 = arith.constant 0 : index
    %89 = arith.index_cast %88 : i32 to index
    %90 = vector.load %arg2[%c0_58, %c1_59, %c0_60, %89] : memref<1x2x4x1024xbf16, #tpu.memory_space<vmem>>, vector<1x1x4x256xbf16>
    %91 = vector.shape_cast %90 : vector<1x1x4x256xbf16> to vector<4x256xbf16>
    %cst_61 = arith.constant dense<0.000000e+00> : vector<128x256xf32>
    %92 = tpu.matmul %4, %91, %cst_61 {dimension_numbers = #tpu.dot_dimension_numbers<[1], [0], [0], [1], [0, 0, 1, 1], [], []>} : vector<128x4xbf16>, vector<4x256xbf16>, vector<128x256xf32> -> vector<128x256xf32>
    %93 = vector.broadcast %6 : vector<128x1xf32> to vector<128x256xf32>
    %94 = arith.addf %92, %93 : vector<128x256xf32>
    %cst_62 = arith.constant 0.000000e+00 : f32
    %95 = vector.broadcast %cst_62 : f32 to vector<128x256xf32>
    %96 = arith.maximumf %94, %95 : vector<128x256xf32>
    %cst_63 = arith.constant dense<0.000000e+00> : vector<128xf32>
    %97 = vector.multi_reduction <add>, %96, %cst_63 [1] : vector<128x256xf32> to vector<128xf32>
    %98 = arith.addf %86, %97 : vector<128xf32>
    %c3_i32_64 = arith.constant 3 : i32
    %c256_i32_65 = arith.constant 256 : i32
    %99 = arith.muli %c3_i32_64, %c256_i32_65 : i32
    %100 = tpu.assume_multiple %99, 128 : i32
    %c0_66 = arith.constant 0 : index
    %c1_67 = arith.constant 1 : index
    %c0_68 = arith.constant 0 : index
    %101 = arith.index_cast %100 : i32 to index
    %102 = vector.load %arg2[%c0_66, %c1_67, %c0_68, %101] : memref<1x2x4x1024xbf16, #tpu.memory_space<vmem>>, vector<1x1x4x256xbf16>
    %103 = vector.shape_cast %102 : vector<1x1x4x256xbf16> to vector<4x256xbf16>
    %cst_69 = arith.constant dense<0.000000e+00> : vector<128x256xf32>
    %104 = tpu.matmul %4, %103, %cst_69 {dimension_numbers = #tpu.dot_dimension_numbers<[1], [0], [0], [1], [0, 0, 1, 1], [], []>} : vector<128x4xbf16>, vector<4x256xbf16>, vector<128x256xf32> -> vector<128x256xf32>
    %105 = vector.broadcast %6 : vector<128x1xf32> to vector<128x256xf32>
    %106 = arith.addf %104, %105 : vector<128x256xf32>
    %cst_70 = arith.constant 0.000000e+00 : f32
    %107 = vector.broadcast %cst_70 : f32 to vector<128x256xf32>
    %108 = arith.maximumf %106, %107 : vector<128x256xf32>
    %cst_71 = arith.constant dense<0.000000e+00> : vector<128xf32>
    %109 = vector.multi_reduction <add>, %108, %cst_71 [1] : vector<128x256xf32> to vector<128xf32>
    %110 = arith.addf %98, %109 : vector<128xf32>
    %c4_i32_72 = arith.constant 4 : i32
    %c0_73 = arith.constant 0 : index
    %c1_74 = arith.constant 1 : index
    %c0_75 = arith.constant 0 : index
    %111 = vector.load %arg7[%c0_73, %c1_74, %c0_75] : memref<1x2x128xf32, #tpu.memory_space<vmem>>, vector<1x1x128xf32>
    %112 = vector.shape_cast %111 : vector<1x1x128xf32> to vector<128xf32>
    %113 = arith.addf %112, %110 : vector<128xf32>
    %c0_76 = arith.constant 0 : index
    %c1_77 = arith.constant 1 : index
    %c0_78 = arith.constant 0 : index
    %114 = vector.load %arg7[%c0_76, %c1_77, %c0_78] : memref<1x2x128xf32, #tpu.memory_space<vmem>>, vector<1x1x128xf32>
    %115 = vector.shape_cast %114 : vector<1x1x128xf32> to vector<128xf32>
    %116 = vector.shape_cast %113 : vector<128xf32> to vector<1x1x128xf32>
    tpu.vector_store %arg7[%c0_76, %c1_77, %c0_78], %116 {strides = array<i32>} : memref<1x2x128xf32, #tpu.memory_space<vmem>>, vector<1x1x128xf32>,
    %c0_i32_79 = arith.constant 0 : i32
    %117 = arith.cmpi eq, %arg1, %c0_i32_79 : i32
    %118 = arith.extui %117 : i1 to i32
    %c0_i32_80 = arith.constant 0 : i32
    %119 = arith.cmpi ne, %118, %c0_i32_80 : i32
    scf.if %119 {
      %c0_81 = arith.constant 0 : index
      %c0_82 = arith.constant 0 : index
      %c0_83 = arith.constant 0 : index
      %120 = vector.load %arg7[%c0_81, %c0_82, %c0_83] : memref<1x2x128xf32, #tpu.memory_space<vmem>>, vector<1x2x128xf32>
      %121 = vector.shape_cast %120 : vector<1x2x128xf32> to vector<2x128xf32>
      %cst_84 = arith.constant 9.765625E-4 : f32
      %122 = vector.broadcast %cst_84 : f32 to vector<2x128xf32>
      %123 = arith.mulf %121, %122 : vector<2x128xf32>
      %c0_85 = arith.constant 0 : index
      %c0_86 = arith.constant 0 : index
      %c0_87 = arith.constant 0 : index
      %124 = vector.load %arg7[%c0_85, %c0_86, %c0_87] : memref<1x2x128xf32, #tpu.memory_space<vmem>>, vector<1x2x128xf32>
      %125 = vector.shape_cast %124 : vector<1x2x128xf32> to vector<2x128xf32>
      %126 = vector.shape_cast %123 : vector<2x128xf32> to vector<1x2x128xf32>
      tpu.vector_store %arg7[%c0_85, %c0_86, %c0_87], %126 {strides = array<i32>} : memref<1x2x128xf32, #tpu.memory_space<vmem>>, vector<1x2x128xf32>,
      %c0_88 = arith.constant 0 : index
      %c0_89 = arith.constant 0 : index
      %c0_90 = arith.constant 0 : index
      %127 = vector.load %arg5[%c0_88, %c0_89, %c0_90] : memref<1x128x128xf32, #tpu.memory_space<vmem>>, vector<1x128x128xf32>
      %128 = vector.shape_cast %127 : vector<1x128x128xf32> to vector<128x128xf32>
      %cst_91 = arith.constant dense<0.000000e+00> : vector<2x128xf32>
      %129 = tpu.matmul %123, %128, %cst_91 {dimension_numbers = #tpu.dot_dimension_numbers<[1], [0], [0], [1], [0, 0, 1, 1], [], []>} : vector<2x128xf32>, vector<128x128xf32>, vector<2x128xf32> -> vector<2x128xf32>
      %c0_92 = arith.constant 0 : index
      %c0_93 = arith.constant 0 : index
      %c0_94 = arith.constant 0 : index
      %130 = vector.load %arg6[%c0_92, %c0_93, %c0_94] : memref<1x1x128xf32, #tpu.memory_space<vmem>>, vector<1x1x128xf32>
      %131 = vector.shape_cast %130 : vector<1x1x128xf32> to vector<1x128xf32>
      %132 = vector.broadcast %131 : vector<1x128xf32> to vector<2x128xf32>
      %133 = arith.addf %129, %132 : vector<2x128xf32>
      %cst_95 = arith.constant 0.000000e+00 : f32
      %134 = vector.broadcast %cst_95 : f32 to vector<2x128xf32>
      %135 = arith.maximumf %133, %134 : vector<2x128xf32>
      %c0_96 = arith.constant 0 : index
      %c0_97 = arith.constant 0 : index
      %c0_98 = arith.constant 0 : index
      %136 = vector.load %arg8[%c0_96, %c0_97, %c0_98] : memref<1x2x128xf32, #tpu.memory_space<vmem>>, vector<1x2x128xf32>
      %137 = vector.shape_cast %136 : vector<1x2x128xf32> to vector<2x128xf32>
      %138 = vector.shape_cast %135 : vector<2x128xf32> to vector<1x2x128xf32>
      tpu.vector_store %arg8[%c0_96, %c0_97, %c0_98], %138 {strides = array<i32>} : memref<1x2x128xf32, #tpu.memory_space<vmem>>, vector<1x2x128xf32>,
    } else {
    }
    return
  }
  func.func @transform_0(%arg0: i32, %arg1: i32) -> (i32, i32, i32, i32) {
    %c0_i32 = arith.constant 0 : i32
    %c0_i32_0 = arith.constant 0 : i32
    %c0_i32_1 = arith.constant 0 : i32
    return %arg0, %c0_i32, %c0_i32_0, %arg1 : i32, i32, i32, i32
  }
  func.func @transform_1(%arg0: i32, %arg1: i32) -> (i32, i32, i32) {
    %c0_i32 = arith.constant 0 : i32
    %c0_i32_0 = arith.constant 0 : i32
    %c0_i32_1 = arith.constant 0 : i32
    return %arg0, %c0_i32, %c0_i32_0 : i32, i32, i32
  }
  func.func @transform_2(%arg0: i32, %arg1: i32) -> (i32, i32, i32) {
    %c0_i32 = arith.constant 0 : i32
    %c0_i32_0 = arith.constant 0 : i32
    %c0_i32_1 = arith.constant 0 : i32
    return %arg0, %c0_i32, %c0_i32_0 : i32, i32, i32
  }
  func.func @transform_3(%arg0: i32, %arg1: i32) -> (i32, i32, i32) {
    %c0_i32 = arith.constant 0 : i32
    %c0_i32_0 = arith.constant 0 : i32
    %c0_i32_1 = arith.constant 0 : i32
    return %arg0, %c0_i32, %c0_i32_0 : i32, i32, i32
  }
  func.func @transform_4(%arg0: i32, %arg1: i32) -> (i32, i32, i32) {
    %c0_i32 = arith.constant 0 : i32
    %c0_i32_0 = arith.constant 0 : i32
    %c0_i32_1 = arith.constant 0 : i32
    return %arg0, %c0_i32, %c0_i32_0 : i32, i32, i32
  }
  func.func @transform_5(%arg0: i32, %arg1: i32) -> (i32, i32, i32) {
    %c0_i32 = arith.constant 0 : i32
    %c0_i32_0 = arith.constant 0 : i32
    %c0_i32_1 = arith.constant 0 : i32
    return %arg0, %c0_i32, %c0_i32_0 : i32, i32, i32
  }
  func.func @transform_6(%arg0: i32, %arg1: i32) -> (i32, i32, i32) {
    %c0_i32 = arith.constant 0 : i32
    %c0_i32_0 = arith.constant 0 : i32
    %c0_i32_1 = arith.constant 0 : i32
    return %arg0, %c0_i32, %c0_i32_0 : i32, i32, i32
  }
}

</mosaic_0001>

<llo_original>
// kernel: two_branch_forward.1
$region0: #{two_branch_forward.1}
  #allocation0 [shape = 'u32[]', space=smem, size = 0x4, offset = 0x4, fixed_abs, tag = 'smem constant byte address 0x4 - core index']
  #allocation1 [shape = 'u32[144,128]{1,0:T(1,128)}', space=vmem, size = 0x12000, scoped, tag = 'internal scratch']
  %s0 = inlined_call_operand.vmem [shape: bf16[2,2,4,1024], index: 0, kind: input, shape index: {}]
  %s1 = inlined_call_operand.vmem [shape: bf16[2,128,4], index: 1, kind: input, shape index: {}]
  %s2 = inlined_call_operand.vmem [shape: f32[2,128,1], index: 2, kind: input, shape index: {}]
  %s3 = inlined_call_operand.vmem [shape: f32[2,128,128], index: 3, kind: input, shape index: {}]
  %s4 = inlined_call_operand.vmem [shape: f32[2,1,128], index: 4, kind: input, shape index: {}]
  %s5 = inlined_call_operand.vmem [shape: f32[2,2,128], index: 5, kind: output, shape index: {0}]
  %s6 = inlined_call_operand.vmem [shape: f32[2,2,128], index: 6, kind: output, shape index: {1}]
  %7 = xla_tuple %s5, %s6
  %s8 = sld [smem:[#allocation0]]
  $region69: #{two_branch_forward.1} parent=0
    _
  %s10 = ssub.s32 1, %s8
  %s11 = scalar_select 0, %s10, %s8
  loop: start=0, step=1, limit=4
  $region2: #{two_branch_forward.1} parent=0 // loop_pre_header
    _
  $region3: #{two_branch_forward.1} parent=0 // loop_header
    %s13 = sphi 0, %s17
    %p14 = scmp.ge.s32.totalorder %s13, 4
    %s20 = sphi 0, %s32
    %s21 = sphi 0, %s28
    %s22 = sphi 0, %s20
    %s23 = sphi 0, %s21
    %s24 = sphi 0, %s22
    %s25 = sphi 0, %s23
    %s37 = sphi 0, %s39
    %s40 = sphi 0, %s37
    %s41 = sphi 0, %s40
    %s57 = sphi 0, %s41
    %s63 = sphi 0, %s65
    %s66 = sphi 0, %s63
    %s67 = sphi 0, %s66
    %s83 = sphi 0, %s67
    %s89 = sphi 0, %s91
    %s92 = sphi 0, %s89
    %s93 = sphi 0, %s92
    %s109 = sphi 0, %s93
    %s115 = sphi 0, %s117
    %s118 = sphi 0, %s115
    %s119 = sphi 0, %s118
    %s135 = sphi 0, %s119
    %s141 = sphi 0, %s143
    %s144 = sphi 0, %s141
    %s145 = sphi 0, %s144
    %s161 = sphi 0, %s145
    %s167 = sphi 0, %s169
    %s170 = sphi 0, %s167
    %s171 = sphi 0, %s170
    %s187 = sphi 0, %s171
    %s193 = sphi 0, %s195
    %s196 = sphi 0, %s193
    %s197 = sphi 0, %s196
    %s213 = sphi 0, %s197
  $region4: #{two_branch_forward.1} parent=0 // loop_header_branch
    %16 = sbr.rel (%p14) target = $region8
  $region5: #{two_branch_forward.1} parent=0 // loop_body
    %s18 = ssub.s32 %s13, 1
    %s19 = ssub.s32 %s13, 2
    %s26 = sadd.s32 1, %s21
    %p27 = scmp.ge.s32.totalorder %s26, 1
    %s28 = scalar_select %p27, 0, %s26
    %s29 = sadd.s32 1, %s20
    %s30 = scalar_select %p27, %s29, %s20
    %p31 = scmp.ge.s32.totalorder %s30, 2
    %s32 = scalar_select %p31, 0, %s30
    %s33 = ssub.s32 %s20, %s32
    %s34 = ssub.s32 %s21, %s28
    %s35 = sor.u32 %s33, %s34
    %p36 = scmp.eq.s32.totalorder %s35, 0
    %s38 = sadd.s32 %s37, 1
    %s39 = scalar_select %p36, %s37, %s38
    %p42 = pneg %p36
    %p43 = scmp.eq.s32.totalorder %s13, 1
    %p44 = por %p42, %p43
    %p45 = scmp.ne.s32.totalorder %s37, %s40
    %p46 = scmp.eq.s32.totalorder %s13, 0
    %p47 = por %p45, %p46
    %p48 = scmp.ne.s32.totalorder %s37, %s40
    %p49 = scmp.eq.s32.totalorder %s18, 1
    %p50 = por %p48, %p49
    %p51 = scmp.ne.s32.totalorder %s40, %s41
    %p52 = scmp.eq.s32.totalorder %s18, 0
    %p53 = por %p51, %p52
    %p54 = scmp.ne.s32.totalorder %s40, %s41
    %p55 = scmp.eq.s32.totalorder %s19, 1
    %p56 = por %p54, %p55
    %p58 = scmp.ne.s32.totalorder %s41, %s57
    %p59 = scmp.eq.s32.totalorder %s19, 0
    %p60 = por %p58, %p59
    %s61 = ssub.s32 %s20, %s32
    %p62 = scmp.eq.s32.totalorder %s61, 0
    %s64 = sadd.s32 %s63, 1
    %s65 = scalar_select %p62, %s63, %s64
    %p68 = pneg %p62
    %p69 = scmp.eq.s32.totalorder %s13, 1
    %p70 = por %p68, %p69
    %p71 = scmp.ne.s32.totalorder %s63, %s66
    %p72 = scmp.eq.s32.totalorder %s13, 0
    %p73 = por %p71, %p72
    %p74 = scmp.ne.s32.totalorder %s63, %s66
    %p75 = scmp.eq.s32.totalorder %s18, 1
    %p76 = por %p74, %p75
    %p77 = scmp.ne.s32.totalorder %s66, %s67
    %p78 = scmp.eq.s32.totalorder %s18, 0
    %p79 = por %p77, %p78
    %p80 = scmp.ne.s32.totalorder %s66, %s67
    %p81 = scmp.eq.s32.totalorder %s19, 1
    %p82 = por %p80, %p81
    %p84 = scmp.ne.s32.totalorder %s67, %s83
    %p85 = scmp.eq.s32.totalorder %s19, 0
    %p86 = por %p84, %p85
    %s87 = ssub.s32 %s20, %s32
    %p88 = scmp.eq.s32.totalorder %s87, 0
    %s90 = sadd.s32 %s89, 1
    %s91 = scalar_select %p88, %s89, %s90
    %p94 = pneg %p88
    %p95 = scmp.eq.s32.totalorder %s13, 1
    %p96 = por %p94, %p95
    %p97 = scmp.ne.s32.totalorder %s89, %s92
    %p98 = scmp.eq.s32.totalorder %s13, 0
    %p99 = por %p97, %p98
    %p100 = scmp.ne.s32.totalorder %s89, %s92
    %p101 = scmp.eq.s32.totalorder %s18, 1
    %p102 = por %p100, %p101
    %p103 = scmp.ne.s32.totalorder %s92, %s93
    %p104 = scmp.eq.s32.totalorder %s18, 0
    %p105 = por %p103, %p104
    %p106 = scmp.ne.s32.totalorder %s92, %s93
    %p107 = scmp.eq.s32.totalorder %s19, 1
    %p108 = por %p106, %p107
    %p110 = scmp.ne.s32.totalorder %s93, %s109
    %p111 = scmp.eq.s32.totalorder %s19, 0
    %p112 = por %p110, %p111
    %s113 = ssub.s32 %s20, %s32
    %p114 = scmp.eq.s32.totalorder %s113, 0
    %s116 = sadd.s32 %s115, 1
    %s117 = scalar_select %p114, %s115, %s116
    %p120 = pneg %p114
    %p121 = scmp.eq.s32.totalorder %s13, 1
    %p122 = por %p120, %p121
    %p123 = scmp.ne.s32.totalorder %s115, %s118
    %p124 = scmp.eq.s32.totalorder %s13, 0
    %p125 = por %p123, %p124
    %p126 = scmp.ne.s32.totalorder %s115, %s118
    %p127 = scmp.eq.s32.totalorder %s18, 1
    %p128 = por %p126, %p127
    %p129 = scmp.ne.s32.totalorder %s118, %s119
    %p130 = scmp.eq.s32.totalorder %s18, 0
    %p131 = por %p129, %p130
    %p132 = scmp.ne.s32.totalorder %s118, %s119
    %p133 = scmp.eq.s32.totalorder %s19, 1
    %p134 = por %p132, %p133
    %p136 = scmp.ne.s32.totalorder %s119, %s135
    %p137 = scmp.eq.s32.totalorder %s19, 0
    %p138 = por %p136, %p137
    %s139 = ssub.s32 %s20, %s32
    %p140 = scmp.eq.s32.totalorder %s139, 0
    %s142 = sadd.s32 %s141, 1
    %s143 = scalar_select %p140, %s141, %s142
    %p146 = pneg %p140
    %p147 = scmp.eq.s32.totalorder %s13, 1
    %p148 = por %p146, %p147
    %p149 = scmp.ne.s32.totalorder %s141, %s144
    %p150 = scmp.eq.s32.totalorder %s13, 0
    %p151 = por %p149, %p150
    %p152 = scmp.ne.s32.totalorder %s141, %s144
    %p153 = scmp.eq.s32.totalorder %s18, 1
    %p154 = por %p152, %p153
    %p155 = scmp.ne.s32.totalorder %s144, %s145
    %p156 = scmp.eq.s32.totalorder %s18, 0
    %p157 = por %p155, %p156
    %p158 = scmp.ne.s32.totalorder %s144, %s145
    %p159 = scmp.eq.s32.totalorder %s19, 1
    %p160 = por %p158, %p159
    %p162 = scmp.ne.s32.totalorder %s145, %s161
    %p163 = scmp.eq.s32.totalorder %s19, 0
    %p164 = por %p162, %p163
    %s165 = ssub.s32 %s20, %s32
    %p166 = scmp.eq.s32.totalorder %s165, 0
    %s168 = sadd.s32 %s167, 1
    %s169 = scalar_select %p166, %s167, %s168
    %p172 = pneg %p166
    %p173 = scmp.eq.s32.totalorder %s13, 1
    %p174 = por %p172, %p173
    %p175 = scmp.ne.s32.totalorder %s167, %s170
    %p176 = scmp.eq.s32.totalorder %s13, 0
    %p177 = por %p175, %p176
    %p178 = scmp.ne.s32.totalorder %s167, %s170
    %p179 = scmp.eq.s32.totalorder %s18, 1
    %p180 = por %p178, %p179
    %p181 = scmp.ne.s32.totalorder %s170, %s171
    %p182 = scmp.eq.s32.totalorder %s18, 0
    %p183 = por %p181, %p182
    %p184 = scmp.ne.s32.totalorder %s170, %s171
    %p185 = scmp.eq.s32.totalorder %s19, 1
    %p186 = por %p184, %p185
    %p188 = scmp.ne.s32.totalorder %s171, %s187
    %p189 = scmp.eq.s32.totalorder %s19, 0
    %p190 = por %p188, %p189
    %s191 = ssub.s32 %s20, %s32
    %p192 = scmp.eq.s32.totalorder %s191, 0
    %s194 = sadd.s32 %s193, 1
    %s195 = scalar_select %p192, %s193, %s194
    %p198 = pneg %p192
    %p199 = scmp.eq.s32.totalorder %s13, 1
    %p200 = por %p198, %p199
    %p201 = scmp.ne.s32.totalorder %s193, %s196
    %p202 = scmp.eq.s32.totalorder %s13, 0
    %p203 = por %p201, %p202
    %p204 = scmp.ne.s32.totalorder %s193, %s196
    %p205 = scmp.eq.s32.totalorder %s18, 1
    %p206 = por %p204, %p205
    %p207 = scmp.ne.s32.totalorder %s196, %s197
    %p208 = scmp.eq.s32.totalorder %s18, 0
    %p209 = por %p207, %p208
    %p210 = scmp.ne.s32.totalorder %s196, %s197
    %p211 = scmp.eq.s32.totalorder %s19, 1
    %p212 = por %p210, %p211
    %p214 = scmp.ne.s32.totalorder %s197, %s213
    %p215 = scmp.eq.s32.totalorder %s19, 0
    %p216 = por %p214, %p215
    %p217 = scmp.le.s32.totalorder 1, %s13
    %p218 = scmp.lt.s32.totalorder %s13, 3
    %p219 = pnand %p217, %p218
    %p220 = pneg %p219
    // Predicated region
    $region9: #{two_branch_forward.1} parent=5 // pred_check
      _
    $region10: #{two_branch_forward.1} parent=5 // pred_check_branch
      %222 = sbr.rel (%p219) target = $region12
    $region11: #{two_branch_forward.1} parent=5 // pred_region
      %s223 = ssub.s32 %s13, 1
    $region12: #{two_branch_forward.1} parent=5 // pred_fallthru
      _
    %p224 = scmp.lt.s32.totalorder %s13, 2
    // Predicated region
    $region13: #{two_branch_forward.1} parent=5 // pred_check
      %p225 = pneg %p224
    $region14: #{two_branch_forward.1} parent=5 // pred_check_branch
      %227 = sbr.rel (%p225) target = $region16
    $region15: #{two_branch_forward.1} parent=5 // pred_region
      // Predicated region
      $region17: #{two_branch_forward.1} parent=15 // pred_check
        %p228 = pneg %p47
      $region18: #{two_branch_forward.1} parent=15 // pred_check_branch
        %230 = sbr.rel (%p228) target = $region20
      $region19: #{two_branch_forward.1} parent=15 // pred_region
        %s231 = smul.u32 8, %s21
        %p232 = scmp.lt.s32.totalorder %s20, 1
        %s233 = scalar_select %p232, %s20, 1
        %p234 = scmp.lt.s32.totalorder %s231, 7
        %s235 = scalar_select %p234, %s231, 7
        %s236 = smul.addr %s233, 16
        %s237 = sadd.s32 %s235, %s236
        %s238 = smul.addr %s237, 2
        %s239 = scalar_lea.vmem %s0, %s238
        %s240 = smul.u32 8, %s21
      $region20: #{two_branch_forward.1} parent=15 // pred_fallthru
        _
      // Predicated region
      $region21: #{two_branch_forward.1} parent=15 // pred_check
        %p241 = pneg %p73
      $region22: #{two_branch_forward.1} parent=15 // pred_check_branch
        %243 = sbr.rel (%p241) target = $region24
      $region23: #{two_branch_forward.1} parent=15 // pred_region
        %p244 = scmp.lt.s32.totalorder %s20, 1
        %s245 = scalar_select %p244, %s20, 1
        %s246 = smul.addr %s245, 16
        %s247 = smul.addr %s246, 4
        %s248 = scalar_lea.vmem %s1, %s247
      $region24: #{two_branch_forward.1} parent=15 // pred_fallthru
        _
      // Predicated region
      $region25: #{two_branch_forward.1} parent=15 // pred_check
        %p249 = pneg %p99
      $region26: #{two_branch_forward.1} parent=15 // pred_check_branch
        %251 = sbr.rel (%p249) target = $region28
      $region27: #{two_branch_forward.1} parent=15 // pred_region
        %p252 = scmp.lt.s32.totalorder %s20, 1
        %s253 = scalar_select %p252, %s20, 1
        %s254 = smul.addr %s253, 16
        %s255 = smul.addr %s254, 8
        %s256 = scalar_lea.vmem %s2, %s255
      $region28: #{two_branch_forward.1} parent=15 // pred_fallthru
        _
      // Predicated region
      $region29: #{two_branch_forward.1} parent=15 // pred_check
        %p257 = pneg %p125
      $region30: #{two_branch_forward.1} parent=15 // pred_check_branch
        %259 = sbr.rel (%p257) target = $region32
      $region31: #{two_branch_forward.1} parent=15 // pred_region
        %p260 = scmp.lt.s32.totalorder %s20, 1
        %s261 = scalar_select %p260, %s20, 1
        %s262 = smul.addr %s261, 16
        %s263 = smul.addr %s262, 8
        %s264 = scalar_lea.vmem %s3, %s263
      $region32: #{two_branch_forward.1} parent=15 // pred_fallthru
        _
      // Predicated region
      $region33: #{two_branch_forward.1} parent=15 // pred_check
        %p265 = pneg %p151
      $region34: #{two_branch_forward.1} parent=15 // pred_check_branch
        %267 = sbr.rel (%p265) target = $region36
      $region35: #{two_branch_forward.1} parent=15 // pred_region
        %p268 = scmp.lt.s32.totalorder %s20, 1
        %s269 = scalar_select %p268, %s20, 1
        %s270 = scalar_lea.vmem %s4, %s269
      $region36: #{two_branch_forward.1} parent=15 // pred_fallthru
        _
    $region16: #{two_branch_forward.1} parent=5 // pred_fallthru
      _
    %p271 = scmp.le.s32.totalorder 1, %s13
    %p272 = scmp.lt.s32.totalorder %s13, 3
    %p273 = pnand %p271, %p272
    %p274 = pneg %p273
    // Predicated region
    $region37: #{two_branch_forward.1} parent=5 // pred_check
      _
    $region38: #{two_branch_forward.1} parent=5 // pred_check_branch
      %276 = sbr.rel (%p273) target = $region40
    $region39: #{two_branch_forward.1} parent=5 // pred_region
      %s277 = ssub.s32 %s13, 1
      %s278 = smul.u32 8, %s23
      %p279 = scmp.lt.s32.totalorder %s22, 1
      %s280 = scalar_select %p279, %s22, 1
      %p281 = scmp.lt.s32.totalorder %s278, 7
      %s282 = scalar_select %p281, %s278, 7
      %s283 = smul.addr %s280, 16
      %s284 = sadd.s32 %s282, %s283
      %s285 = smul.addr %s284, 2
      %s286 = scalar_lea.vmem %s0, %s285
      %p287 = pneg %p53
      %p288 = pneg %p50
      %p289 = scmp.lt.s32.totalorder %s22, 1
      %s290 = scalar_select %p289, %s22, 1
      %s291 = smul.addr %s290, 16
      %s292 = smul.addr %s291, 4
      %s293 = scalar_lea.vmem %s1, %s292
      %p294 = pneg %p79
      %p295 = pneg %p76
      %p296 = scmp.lt.s32.totalorder %s22, 1
      %s297 = scalar_select %p296, %s22, 1
      %s298 = smul.addr %s297, 16
      %s299 = smul.addr %s298, 8
      %s300 = scalar_lea.vmem %s2, %s299
      %p301 = pneg %p105
      %p302 = pneg %p102
      %p303 = scmp.lt.s32.totalorder %s22, 1
      %s304 = scalar_select %p303, %s22, 1
      %s305 = smul.addr %s304, 16
      %s306 = smul.addr %s305, 8
      %s307 = scalar_lea.vmem %s3, %s306
      %p308 = pneg %p131
      %p309 = pneg %p128
      %p310 = scmp.lt.s32.totalorder %s22, 1
      %s311 = scalar_select %p310, %s22, 1
      %s312 = scalar_lea.vmem %s4, %s311
      %p313 = pneg %p157
      %p314 = pneg %p154
      %p315 = pneg %p183
      %p316 = pneg %p180
      %p317 = scmp.lt.s32.totalorder %s22, 1
      %s318 = scalar_select %p317, %s22, 1
      %s319 = smul.addr %s318, 2
      %s320 = scalar_lea.vmem %s5, %s319
      %p321 = pneg %p209
      %p322 = pneg %p206
      %p323 = scmp.lt.s32.totalorder %s22, 1
      %s324 = scalar_select %p323, %s22, 1
      %s325 = smul.addr %s324, 2
      %s326 = scalar_lea.vmem %s6, %s325
      %s327 = smul.u32 8, %s23
      %p328 = scmp.lt.s32.totalorder %s22, 1
      %s329 = scalar_select %p328, %s22, 1
      %p330 = scmp.lt.s32.totalorder %s327, 7
      %s331 = scalar_select %p330, %s327, 7
      %s332 = smul.addr %s329, 16
      %s333 = sadd.s32 %s331, %s332
      %s334 = smul.addr %s333, 2
      %s335 = scalar_lea.vmem %s0, %s334
      %s336 = smul.u32 8, %s23
      %p337 = scmp.lt.s32.totalorder %s22, 1
      %s338 = scalar_select %p337, %s22, 1
      %s339 = smul.addr %s338, 16
      %s340 = smul.addr %s339, 4
      %s341 = scalar_lea.vmem %s1, %s340
      %p342 = scmp.lt.s32.totalorder %s22, 1
      %s343 = scalar_select %p342, %s22, 1
      %s344 = smul.addr %s343, 16
      %s345 = smul.addr %s344, 8
      %s346 = scalar_lea.vmem %s2, %s345
      %p347 = scmp.lt.s32.totalorder %s22, 1
      %s348 = scalar_select %p347, %s22, 1
      %s349 = smul.addr %s348, 16
      %s350 = smul.addr %s349, 8
      %s351 = scalar_lea.vmem %s3, %s350
      %p352 = scmp.lt.s32.totalorder %s22, 1
      %s353 = scalar_select %p352, %s22, 1
      %s354 = scalar_lea.vmem %s4, %s353
      %p355 = scmp.lt.s32.totalorder %s22, 1
      %s356 = scalar_select %p355, %s22, 1
      %s357 = smul.addr %s356, 2
      %s358 = scalar_lea.vmem %s5, %s357
      %p359 = scmp.lt.s32.totalorder %s22, 1
      %s360 = scalar_select %p359, %s22, 1
      %s361 = smul.addr %s360, 2
      %s362 = scalar_lea.vmem %s6, %s361
      %p364 = scmp.eq.s32.totalorder %s23, 0
      // Predicated region
      $region41: #{two_branch_forward.1} parent=39 // pred_check
        %p365 = pneg %p364
      $region42: #{two_branch_forward.1} parent=39 // pred_check_branch
        %367 = sbr.rel (%p365) target = $region44
      $region43: #{two_branch_forward.1} parent=39 // pred_region
        %368 = vst [vmem:[%s358] sm:$0x3] 0.0
      $region44: #{two_branch_forward.1} parent=39 // pred_fallthru
        _
      %v369 = vld [vmem:[%s341] sm:$0xf]
      %v370 = vld [vmem:[%s341 + $0x4] sm:$0xf]
      %v371 = vld [vmem:[%s341 + $0x8] sm:$0xf]
      %v372 = vld [vmem:[%s341 + $0xc] sm:$0xf]
      %v373 = vld [vmem:[%s341 + $0x10] sm:$0xf]
      %v374 = vld [vmem:[%s341 + $0x14] sm:$0xf]
      %v375 = vld [vmem:[%s341 + $0x18] sm:$0xf]
      %v376 = vld [vmem:[%s341 + $0x1c] sm:$0xf]
      %v377 = vld [vmem:[%s341 + $0x20] sm:$0xf]
      %v378 = vld [vmem:[%s341 + $0x24] sm:$0xf]
      %v379 = vld [vmem:[%s341 + $0x28] sm:$0xf]
      %v380 = vld [vmem:[%s341 + $0x2c] sm:$0xf]
      %v381 = vld [vmem:[%s341 + $0x30] sm:$0xf]
      %v382 = vld [vmem:[%s341 + $0x34] sm:$0xf]
      %v383 = vld [vmem:[%s341 + $0x38] sm:$0xf]
      %v384 = vld [vmem:[%s341 + $0x3c] sm:$0xf]
      %v385 = vld [vmem:[%s346] sm:$0xff]
      %v386 = vld [vmem:[%s346 + $0x8] sm:$0xff]
      %v387 = vld [vmem:[%s346 + $0x10] sm:$0xff]
      %v388 = vld [vmem:[%s346 + $0x18] sm:$0xff]
      %v389 = vld [vmem:[%s346 + $0x20] sm:$0xff]
      %v390 = vld [vmem:[%s346 + $0x28] sm:$0xff]
      %v391 = vld [vmem:[%s346 + $0x30] sm:$0xff]
      %v392 = vld [vmem:[%s346 + $0x38] sm:$0xff]
      %v393 = vld [vmem:[%s346 + $0x40] sm:$0xff]
      %v394 = vld [vmem:[%s346 + $0x48] sm:$0xff]
      %v395 = vld [vmem:[%s346 + $0x50] sm:$0xff]
      %v396 = vld [vmem:[%s346 + $0x58] sm:$0xff]
      %v397 = vld [vmem:[%s346 + $0x60] sm:$0xff]
      %v398 = vld [vmem:[%s346 + $0x68] sm:$0xff]
      %v399 = vld [vmem:[%s346 + $0x70] sm:$0xff]
      %v400 = vld [vmem:[%s346 + $0x78] sm:$0xff]
      %v401 = vld [vmem:[%s335] sm:$0xf]
      %403 = vset.pattern.permute.xlu0 0
      %404 = vperm.xlu0 %403, %v385
      %v405 = vpop.permute.xlu0 %404
      %408 = vset.pattern.permute.xlu0 0
      %409 = vperm.xlu0 %408, %v386
      %v410 = vpop.permute.xlu0 %409
      %413 = vset.pattern.permute.xlu0 0
      %414 = vperm.xlu0 %413, %v387
      %v415 = vpop.permute.xlu0 %414
      %418 = vset.pattern.permute.xlu0 0
      %419 = vperm.xlu0 %418, %v388
      %v420 = vpop.permute.xlu0 %419
      %423 = vset.pattern.permute.xlu0 0
      %424 = vperm.xlu0 %423, %v389
      %v425 = vpop.permute.xlu0 %424
      %428 = vset.pattern.permute.xlu0 0
      %429 = vperm.xlu0 %428, %v390
      %v430 = vpop.permute.xlu0 %429
      %433 = vset.pattern.permute.xlu0 0
      %434 = vperm.xlu0 %433, %v391
      %v435 = vpop.permute.xlu0 %434
      %438 = vset.pattern.permute.xlu0 0
      %439 = vperm.xlu0 %438, %v392
      %v440 = vpop.permute.xlu0 %439
      %443 = vset.pattern.permute.xlu0 0
      %444 = vperm.xlu0 %443, %v393
      %v445 = vpop.permute.xlu0 %444
      %448 = vset.pattern.permute.xlu0 0
      %449 = vperm.xlu0 %448, %v394
      %v450 = vpop.permute.xlu0 %449
      %453 = vset.pattern.permute.xlu0 0
      %454 = vperm.xlu0 %453, %v395
      %v455 = vpop.permute.xlu0 %454
      %458 = vset.pattern.permute.xlu0 0
      %459 = vperm.xlu0 %458, %v396
      %v460 = vpop.permute.xlu0 %459
      %463 = vset.pattern.permute.xlu0 0
      %464 = vperm.xlu0 %463, %v397
      %v465 = vpop.permute.xlu0 %464
      %468 = vset.pattern.permute.xlu0 0
      %469 = vperm.xlu0 %468, %v398
      %v470 = vpop.permute.xlu0 %469
      %473 = vset.pattern.permute.xlu0 0
      %474 = vperm.xlu0 %473, %v399
      %v475 = vpop.permute.xlu0 %474
      %478 = vset.pattern.permute.xlu0 0
      %479 = vperm.xlu0 %478, %v400
      %v480 = vpop.permute.xlu0 %479
      %v498 = vunpack.c.l.b16 %v369
      %v499 = vunpack.c.l.b16 %v370
      %v500 = vunpack.c.l.b16 %v371
      %v501 = vunpack.c.l.b16 %v372
      %v502 = vunpack.c.l.b16 %v373
      %v503 = vunpack.c.l.b16 %v374
      %v504 = vunpack.c.l.b16 %v375
      %v505 = vunpack.c.l.b16 %v376
      %v506 = vunpack.c.l.b16 %v377
      %v507 = vunpack.c.l.b16 %v378
      %v508 = vunpack.c.l.b16 %v379
      %v509 = vunpack.c.l.b16 %v380
      %v510 = vunpack.c.l.b16 %v381
      %v511 = vunpack.c.l.b16 %v382
      %v512 = vunpack.c.l.b16 %v383
      %v513 = vunpack.c.l.b16 %v384
      %v514 = vpack.c.b16 %v499, %v498
      %v515 = vpack.c.b16 %v501, %v500
      %v516 = vpack.c.b16 %v503, %v502
      %v517 = vpack.c.b16 %v505, %v504
      %v518 = vpack.c.b16 %v507, %v506
      %v519 = vpack.c.b16 %v509, %v508
      %v520 = vpack.c.b16 %v511, %v510
      %v521 = vpack.c.b16 %v513, %v512
      %v524 = vunpack.c.l.s4 1983009808
      %v525 = vunpack.c.0.s8 %v524
      %v526 = vlaneseq
      %v527 = vshrl.u32 %v526, 7
      %v528 = vsub.s32 %v525, %v527
      %v529 = vrot.slane %v401, %v528
      %v530 = vcombine.high %v529, %v529
      %vm531 = vcmask 31744
      %v533 = vsel %vm531, %v514, 0
      %v536 = vsel %vm531, %v515, 0
      %v539 = vsel %vm531, %v516, 0
      %v542 = vsel %vm531, %v517, 0
      %v545 = vsel %vm531, %v518, 0
      %v548 = vsel %vm531, %v519, 0
      %v551 = vsel %vm531, %v520, 0
      %v554 = vsel %vm531, %v521, 0
      %vm556 = vcmask 1041408
      %v558 = vsel %vm556, %v529, 0
      %v561 = vsel %vm556, %v530, 0
      %563 = vmatprep.subr.bf16.mxu0 %v561
      %564 = vmatpush1.bf16.msra.mxu0 %v558
      %565 = vmatprep.subr.bf16.mxu0 0
      %566 = vmatpush1.bf16.msra.mxu0 0
      %567 = vmatprep.subr.bf16.mxu0 0
      %568 = vmatpush1.bf16.msra.mxu0 0
      %569 = vmatprep.subr.bf16.mxu0 0
      %570 = vmatpush1.bf16.msra.mxu0 0
      %571 = vmatprep.subr.bf16.mxu0 0
      %572 = vmatpush1.bf16.msra.mxu0 0
      %573 = vmatprep.subr.bf16.mxu0 0
      %574 = vmatpush1.bf16.msra.mxu0 0
      %575 = vmatprep.subr.bf16.mxu0 0
      %576 = vmatpush1.bf16.msra.mxu0 0
      %577 = vmatprep.subr.bf16.mxu0 0
      %578 = vmatpush1.bf16.msra.mxu0 0
      %579 = vmatprep.subr.bf16.mxu0 0
      %580 = vmatpush1.bf16.msra.mxu0 0
      %581 = vmatprep.subr.bf16.mxu0 0
      %582 = vmatpush1.bf16.msra.mxu0 0
      %583 = vmatprep.subr.bf16.mxu0 0
      %584 = vmatpush1.bf16.msra.mxu0 0
      %585 = vmatprep.subr.bf16.mxu0 0
      %586 = vmatpush1.bf16.msra.mxu0 0
      %587 = vmatprep.subr.bf16.mxu0 0
      %588 = vmatpush1.bf16.msra.mxu0 0
      %589 = vmatprep.subr.bf16.mxu0 0
      %590 = vmatpush1.bf16.msra.mxu0 0
      %591 = vmatprep.subr.bf16.mxu0 0
      %592 = vmatpush1.bf16.msra.mxu0 0
      %593 = vmatprep.subr.bf16.mxu0 0
      %594 = vmatpush1.bf16.msra.mxu0 0
      %595 = vmatprep.mubr.bf16.mxu0 0
      %596 = vmatmul.mubr.bf16.gmra.mrb[0].mxu0 %v533
      %v597 = vpop.f32.mrb[0].mxu0
      %v598 = vadd.f32 %v405, %v597
      %v599 = vpop.f32.mrb[0].mxu0
      %v600 = vadd.f32 %v405, %v599
      %v601 = vpop.f32.mrb[0].mxu0
      %v602 = vadd.f32 %v410, %v601
      %v603 = vpop.f32.mrb[0].mxu0
      %v604 = vadd.f32 %v410, %v603
      %605 = vmatprep.mubr.bf16.mxu0 0
      %606 = vmatmul.mubr.bf16.gmra.mrb[0].mxu0 %v536
      %v607 = vpop.f32.mrb[0].mxu0
      %v608 = vadd.f32 %v415, %v607
      %v609 = vpop.f32.mrb[0].mxu0
      %v610 = vadd.f32 %v415, %v609
      %v611 = vpop.f32.mrb[0].mxu0
      %v612 = vadd.f32 %v420, %v611
      %v613 = vpop.f32.mrb[0].mxu0
      %v614 = vadd.f32 %v420, %v613
      %615 = vmatprep.mubr.bf16.mxu0 0
      %616 = vmatmul.mubr.bf16.gmra.mrb[0].mxu0 %v539
      %v617 = vpop.f32.mrb[0].mxu0
      %v618 = vadd.f32 %v425, %v617
      %v619 = vpop.f32.mrb[0].mxu0
      %v620 = vadd.f32 %v425, %v619
      %v621 = vpop.f32.mrb[0].mxu0
      %v622 = vadd.f32 %v430, %v621
      %v623 = vpop.f32.mrb[0].mxu0
      %v624 = vadd.f32 %v430, %v623
      %625 = vmatprep.mubr.bf16.mxu0 0
      %626 = vmatmul.mubr.bf16.gmra.mrb[0].mxu0 %v542
      %v627 = vpop.f32.mrb[0].mxu0
      %v628 = vadd.f32 %v435, %v627
      %v629 = vpop.f32.mrb[0].mxu0
      %v630 = vadd.f32 %v435, %v629
      %v631 = vpop.f32.mrb[0].mxu0
      %v632 = vadd.f32 %v440, %v631
      %v633 = vpop.f32.mrb[0].mxu0
      %v634 = vadd.f32 %v440, %v633
      %635 = vmatprep.mubr.bf16.mxu0 0
      %636 = vmatmul.mubr.bf16.gmra.mrb[0].mxu0 %v545
      %v637 = vpop.f32.mrb[0].mxu0
      %v638 = vadd.f32 %v445, %v637
      %v639 = vpop.f32.mrb[0].mxu0
      %v640 = vadd.f32 %v445, %v639
      %v641 = vpop.f32.mrb[0].mxu0
      %v642 = vadd.f32 %v450, %v641
      %v643 = vpop.f32.mrb[0].mxu0
      %v644 = vadd.f32 %v450, %v643
      %645 = vmatprep.mubr.bf16.mxu0 0
      %646 = vmatmul.mubr.bf16.gmra.mrb[0].mxu0 %v548
      %v647 = vpop.f32.mrb[0].mxu0
      %v648 = vadd.f32 %v455, %v647
      %v649 = vpop.f32.mrb[0].mxu0
      %v650 = vadd.f32 %v455, %v649
      %v651 = vpop.f32.mrb[0].mxu0
      %v652 = vadd.f32 %v460, %v651
      %v653 = vpop.f32.mrb[0].mxu0
      %v654 = vadd.f32 %v460, %v653
      %655 = vmatprep.mubr.bf16.mxu0 0
      %656 = vmatmul.mubr.bf16.gmra.mrb[0].mxu0 %v551
      %v657 = vpop.f32.mrb[0].mxu0
      %v658 = vadd.f32 %v465, %v657
      %v659 = vpop.f32.mrb[0].mxu0
      %v660 = vadd.f32 %v465, %v659
      %v661 = vpop.f32.mrb[0].mxu0
      %v662 = vadd.f32 %v470, %v661
      %v663 = vpop.f32.mrb[0].mxu0
      %v664 = vadd.f32 %v470, %v663
      %665 = vmatprep.mubr.bf16.mxu0 0
      %666 = vmatmul.mubr.bf16.gmra.mrb[0].mxu0 %v554
      %v667 = vpop.f32.mrb[0].mxu0
      %v668 = vadd.f32 %v475, %v667
      %v669 = vpop.f32.mrb[0].mxu0
      %v670 = vadd.f32 %v475, %v669
      %v671 = vpop.f32.mrb[0].mxu0
      %v672 = vadd.f32 %v480, %v671
      %v673 = vpop.f32.mrb[0].mxu0
      %v674 = vadd.f32 %v480, %v673
      %675 = vdwg.mxu0
      %v676 = vmax.f32 %v598, 0.0
      %v677 = vmax.f32 %v600, 0.0
      %v678 = vmax.f32 %v602, 0.0
      %v679 = vmax.f32 %v604, 0.0
      %v680 = vmax.f32 %v608, 0.0
      %v681 = vmax.f32 %v610, 0.0
      %v682 = vmax.f32 %v612, 0.0
      %v683 = vmax.f32 %v614, 0.0
      %v684 = vmax.f32 %v618, 0.0
      %v685 = vmax.f32 %v620, 0.0
      %v686 = vmax.f32 %v622, 0.0
      %v687 = vmax.f32 %v624, 0.0
      %v688 = vmax.f32 %v628, 0.0
      %v689 = vmax.f32 %v630, 0.0
      %v690 = vmax.f32 %v632, 0.0
      %v691 = vmax.f32 %v634, 0.0
      %v692 = vmax.f32 %v638, 0.0
      %v693 = vmax.f32 %v640, 0.0
      %v694 = vmax.f32 %v642, 0.0
      %v695 = vmax.f32 %v644, 0.0
      %v696 = vmax.f32 %v648, 0.0
      %v697 = vmax.f32 %v650, 0.0
      %v698 = vmax.f32 %v652, 0.0
      %v699 = vmax.f32 %v654, 0.0
      %v700 = vmax.f32 %v658, 0.0
      %v701 = vmax.f32 %v660, 0.0
      %v702 = vmax.f32 %v662, 0.0
      %v703 = vmax.f32 %v664, 0.0
      %v704 = vmax.f32 %v668, 0.0
      %v705 = vmax.f32 %v670, 0.0
      %v706 = vmax.f32 %v672, 0.0
      %v707 = vmax.f32 %v674, 0.0
      %v708 = vadd.f32 %v676, %v677
      %709 = vadd.xlane.f32.xlu0 %v708
      %v710 = vpop.xlane.xlu0 %709
      %v711 = vadd.f32 %v678, %v679
      %712 = vadd.xlane.f32.xlu0 %v711
      %v713 = vpop.xlane.xlu0 %712
      %v714 = vadd.f32 %v680, %v681
      %715 = vadd.xlane.f32.xlu0 %v714
      %v716 = vpop.xlane.xlu0 %715
      %v717 = vadd.f32 %v682, %v683
      %718 = vadd.xlane.f32.xlu0 %v717
      %v719 = vpop.xlane.xlu0 %718
      %v720 = vadd.f32 %v684, %v685
      %721 = vadd.xlane.f32.xlu0 %v720
      %v722 = vpop.xlane.xlu0 %721
      %v723 = vadd.f32 %v686, %v687
      %724 = vadd.xlane.f32.xlu0 %v723
      %v725 = vpop.xlane.xlu0 %724
      %v726 = vadd.f32 %v688, %v689
      %727 = vadd.xlane.f32.xlu0 %v726
      %v728 = vpop.xlane.xlu0 %727
      %v729 = vadd.f32 %v690, %v691
      %730 = vadd.xlane.f32.xlu0 %v729
      %v731 = vpop.xlane.xlu0 %730
      %v732 = vadd.f32 %v692, %v693
      %733 = vadd.xlane.f32.xlu0 %v732
      %v734 = vpop.xlane.xlu0 %733
      %v735 = vadd.f32 %v694, %v695
      %736 = vadd.xlane.f32.xlu0 %v735
      %v737 = vpop.xlane.xlu0 %736
      %v738 = vadd.f32 %v696, %v697
      %739 = vadd.xlane.f32.xlu0 %v738
      %v740 = vpop.xlane.xlu0 %739
      %v741 = vadd.f32 %v698, %v699
      %742 = vadd.xlane.f32.xlu0 %v741
      %v743 = vpop.xlane.xlu0 %742
      %v744 = vadd.f32 %v700, %v701
      %745 = vadd.xlane.f32.xlu0 %v744
      %v746 = vpop.xlane.xlu0 %745
      %v747 = vadd.f32 %v702, %v703
      %748 = vadd.xlane.f32.xlu0 %v747
      %v749 = vpop.xlane.xlu0 %748
      %v750 = vadd.f32 %v704, %v705
      %751 = vadd.xlane.f32.xlu0 %v750
      %v752 = vpop.xlane.xlu0 %751
      %v753 = vadd.f32 %v706, %v707
      %754 = vadd.xlane.f32.xlu0 %v753
      %v755 = vpop.xlane.xlu0 %754
      %v756 = vadd.f32 %v710, 0.0
      %v757 = vadd.f32 %v713, 0.0
      %v758 = vadd.f32 %v716, 0.0
      %v759 = vadd.f32 %v719, 0.0
      %v760 = vadd.f32 %v722, 0.0
      %v761 = vadd.f32 %v725, 0.0
      %v762 = vadd.f32 %v728, 0.0
      %v763 = vadd.f32 %v731, 0.0
      %v764 = vadd.f32 %v734, 0.0
      %v765 = vadd.f32 %v737, 0.0
      %v766 = vadd.f32 %v740, 0.0
      %v767 = vadd.f32 %v743, 0.0
      %v768 = vadd.f32 %v746, 0.0
      %v769 = vadd.f32 %v749, 0.0
      %v770 = vadd.f32 %v752, 0.0
      %v771 = vadd.f32 %v755, 0.0
      %s772 = scalar_lea.vmem %s335, 4
      %v773 = vld [vmem:[%s772] sm:$0xf]
      %v776 = vunpack.c.l.s4 1983009808
      %v777 = vunpack.c.0.s8 %v776
      %v778 = vlaneseq
      %v779 = vshrl.u32 %v778, 7
      %v780 = vsub.s32 %v777, %v779
      %v781 = vrot.slane %v773, %v780
      %v782 = vcombine.high %v781, %v781
      %v784 = vsel %vm556, %v781, 0
      %v787 = vsel %vm556, %v782, 0
      %789 = vmatprep.subr.bf16.mxu0 %v787
      %790 = vmatpush1.bf16.msra.mxu0 %v784
      %791 = vmatprep.subr.bf16.mxu0 0
      %792 = vmatpush1.bf16.msra.mxu0 0
      %793 = vmatprep.subr.bf16.mxu0 0
      %794 = vmatpush1.bf16.msra.mxu0 0
      %795 = vmatprep.subr.bf16.mxu0 0
      %796 = vmatpush1.bf16.msra.mxu0 0
      %797 = vmatprep.subr.bf16.mxu0 0
      %798 = vmatpush1.bf16.msra.mxu0 0
      %799 = vmatprep.subr.bf16.mxu0 0
      %800 = vmatpush1.bf16.msra.mxu0 0
      %801 = vmatprep.subr.bf16.mxu0 0
      %802 = vmatpush1.bf16.msra.mxu0 0
      %803 = vmatprep.subr.bf16.mxu0 0
      %804 = vmatpush1.bf16.msra.mxu0 0
      %805 = vmatprep.subr.bf16.mxu0 0
      %806 = vmatpush1.bf16.msra.mxu0 0
      %807 = vmatprep.subr.bf16.mxu0 0
      %808 = vmatpush1.bf16.msra.mxu0 0
      %809 = vmatprep.subr.bf16.mxu0 0
      %810 = vmatpush1.bf16.msra.mxu0 0
      %811 = vmatprep.subr.bf16.mxu0 0
      %812 = vmatpush1.bf16.msra.mxu0 0
      %813 = vmatprep.subr.bf16.mxu0 0
      %814 = vmatpush1.bf16.msra.mxu0 0
      %815 = vmatprep.subr.bf16.mxu0 0
      %816 = vmatpush1.bf16.msra.mxu0 0
      %817 = vmatprep.subr.bf16.mxu0 0
      %818 = vmatpush1.bf16.msra.mxu0 0
      %819 = vmatprep.subr.bf16.mxu0 0
      %820 = vmatpush1.bf16.msra.mxu0 0
      %821 = vmatprep.mubr.bf16.mxu0 0
      %822 = vmatmul.mubr.bf16.gmra.mrb[0].mxu0 %v533
      %v823 = vpop.f32.mrb[0].mxu0
      %v824 = vadd.f32 %v405, %v823
      %v825 = vpop.f32.mrb[0].mxu0
      %v826 = vadd.f32 %v405, %v825
      %v827 = vpop.f32.mrb[0].mxu0
      %v828 = vadd.f32 %v410, %v827
      %v829 = vpop.f32.mrb[0].mxu0
      %v830 = vadd.f32 %v410, %v829
      %831 = vmatprep.mubr.bf16.mxu0 0
      %832 = vmatmul.mubr.bf16.gmra.mrb[0].mxu0 %v536
      %v833 = vpop.f32.mrb[0].mxu0
      %v834 = vadd.f32 %v415, %v833
      %v835 = vpop.f32.mrb[0].mxu0
      %v836 = vadd.f32 %v415, %v835
      %v837 = vpop.f32.mrb[0].mxu0
      %v838 = vadd.f32 %v420, %v837
      %v839 = vpop.f32.mrb[0].mxu0
      %v840 = vadd.f32 %v420, %v839
      %841 = vmatprep.mubr.bf16.mxu0 0
      %842 = vmatmul.mubr.bf16.gmra.mrb[0].mxu0 %v539
      %v843 = vpop.f32.mrb[0].mxu0
      %v844 = vadd.f32 %v425, %v843
      %v845 = vpop.f32.mrb[0].mxu0
      %v846 = vadd.f32 %v425, %v845
      %v847 = vpop.f32.mrb[0].mxu0
      %v848 = vadd.f32 %v430, %v847
      %v849 = vpop.f32.mrb[0].mxu0
      %v850 = vadd.f32 %v430, %v849
      %851 = vmatprep.mubr.bf16.mxu0 0
      %852 = vmatmul.mubr.bf16.gmra.mrb[0].mxu0 %v542
      %v853 = vpop.f32.mrb[0].mxu0
      %v854 = vadd.f32 %v435, %v853
      %v855 = vpop.f32.mrb[0].mxu0
      %v856 = vadd.f32 %v435, %v855
      %v857 = vpop.f32.mrb[0].mxu0
      %v858 = vadd.f32 %v440, %v857
      %v859 = vpop.f32.mrb[0].mxu0
      %v860 = vadd.f32 %v440, %v859
      %861 = vmatprep.mubr.bf16.mxu0 0
      %862 = vmatmul.mubr.bf16.gmra.mrb[0].mxu0 %v545
      %v863 = vpop.f32.mrb[0].mxu0
      %v864 = vadd.f32 %v445, %v863
      %v865 = vpop.f32.mrb[0].mxu0
      %v866 = vadd.f32 %v445, %v865
      %v867 = vpop.f32.mrb[0].mxu0
      %v868 = vadd.f32 %v450, %v867
      %v869 = vpop.f32.mrb[0].mxu0
      %v870 = vadd.f32 %v450, %v869
      %871 = vmatprep.mubr.bf16.mxu0 0
      %872 = vmatmul.mubr.bf16.gmra.mrb[0].mxu0 %v548
      %v873 = vpop.f32.mrb[0].mxu0
      %v874 = vadd.f32 %v455, %v873
      %v875 = vpop.f32.mrb[0].mxu0
      %v876 = vadd.f32 %v455, %v875
      %v877 = vpop.f32.mrb[0].mxu0
      %v878 = vadd.f32 %v460, %v877
      %v879 = vpop.f32.mrb[0].mxu0
      %v880 = vadd.f32 %v460, %v879
      %881 = vmatprep.mubr.bf16.mxu0 0
      %882 = vmatmul.mubr.bf16.gmra.mrb[0].mxu0 %v551
      %v883 = vpop.f32.mrb[0].mxu0
      %v884 = vadd.f32 %v465, %v883
      %v885 = vpop.f32.mrb[0].mxu0
      %v886 = vadd.f32 %v465, %v885
      %v887 = vpop.f32.mrb[0].mxu0
      %v888 = vadd.f32 %v470, %v887
      %v889 = vpop.f32.mrb[0].mxu0
      %v890 = vadd.f32 %v470, %v889
      %891 = vmatprep.mubr.bf16.mxu0 0
      %892 = vmatmul.mubr.bf16.gmra.mrb[0].mxu0 %v554
      %v893 = vpop.f32.mrb[0].mxu0
      %v894 = vadd.f32 %v475, %v893
      %v895 = vpop.f32.mrb[0].mxu0
      %v896 = vadd.f32 %v475, %v895
      %v897 = vpop.f32.mrb[0].mxu0
      %v898 = vadd.f32 %v480, %v897
      %v899 = vpop.f32.mrb[0].mxu0
      %v900 = vadd.f32 %v480, %v899
      %901 = vdwg.mxu0
      %v902 = vmax.f32 %v824, 0.0
      %v903 = vmax.f32 %v826, 0.0
      %v904 = vmax.f32 %v828, 0.0
      %v905 = vmax.f32 %v830, 0.0
      %v906 = vmax.f32 %v834, 0.0
      %v907 = vmax.f32 %v836, 0.0
      %v908 = vmax.f32 %v838, 0.0
      %v909 = vmax.f32 %v840, 0.0
      %v910 = vmax.f32 %v844, 0.0
      %v911 = vmax.f32 %v846, 0.0
      %v912 = vmax.f32 %v848, 0.0
      %v913 = vmax.f32 %v850, 0.0
      %v914 = vmax.f32 %v854, 0.0
      %v915 = vmax.f32 %v856, 0.0
      %v916 = vmax.f32 %v858, 0.0
      %v917 = vmax.f32 %v860, 0.0
      %v918 = vmax.f32 %v864, 0.0
      %v919 = vmax.f32 %v866, 0.0
      %v920 = vmax.f32 %v868, 0.0
      %v921 = vmax.f32 %v870, 0.0
      %v922 = vmax.f32 %v874, 0.0
      %v923 = vmax.f32 %v876, 0.0
      %v924 = vmax.f32 %v878, 0.0
      %v925 = vmax.f32 %v880, 0.0
      %v926 = vmax.f32 %v884, 0.0
      %v927 = vmax.f32 %v886, 0.0
      %v928 = vmax.f32 %v888, 0.0
      %v929 = vmax.f32 %v890, 0.0
      %v930 = vmax.f32 %v894, 0.0
      %v931 = vmax.f32 %v896, 0.0
      %v932 = vmax.f32 %v898, 0.0
      %v933 = vmax.f32 %v900, 0.0
      %v934 = vadd.f32 %v902, %v903
      %935 = vadd.xlane.f32.xlu0 %v934
      %v936 = vpop.xlane.xlu0 %935
      %v937 = vadd.f32 %v904, %v905
      %938 = vadd.xlane.f32.xlu0 %v937
      %v939 = vpop.xlane.xlu0 %938
      %v940 = vadd.f32 %v906, %v907
      %941 = vadd.xlane.f32.xlu0 %v940
      %v942 = vpop.xlane.xlu0 %941
      %v943 = vadd.f32 %v908, %v909
      %944 = vadd.xlane.f32.xlu0 %v943
      %v945 = vpop.xlane.xlu0 %944
      %v946 = vadd.f32 %v910, %v911
      %947 = vadd.xlane.f32.xlu0 %v946
      %v948 = vpop.xlane.xlu0 %947
      %v949 = vadd.f32 %v912, %v913
      %950 = vadd.xlane.f32.xlu0 %v949
      %v951 = vpop.xlane.xlu0 %950
      %v952 = vadd.f32 %v914, %v915
      %953 = vadd.xlane.f32.xlu0 %v952
      %v954 = vpop.xlane.xlu0 %953
      %v955 = vadd.f32 %v916, %v917
      %956 = vadd.xlane.f32.xlu0 %v955
      %v957 = vpop.xlane.xlu0 %956
      %v958 = vadd.f32 %v918, %v919
      %959 = vadd.xlane.f32.xlu0 %v958
      %v960 = vpop.xlane.xlu0 %959
      %v961 = vadd.f32 %v920, %v921
      %962 = vadd.xlane.f32.xlu0 %v961
      %v963 = vpop.xlane.xlu0 %962
      %v964 = vadd.f32 %v922, %v923
      %965 = vadd.xlane.f32.xlu0 %v964
      %v966 = vpop.xlane.xlu0 %965
      %v967 = vadd.f32 %v924, %v925
      %968 = vadd.xlane.f32.xlu0 %v967
      %v969 = vpop.xlane.xlu0 %968
      %v970 = vadd.f32 %v926, %v927
      %971 = vadd.xlane.f32.xlu0 %v970
      %v972 = vpop.xlane.xlu0 %971
      %v973 = vadd.f32 %v928, %v929
      %974 = vadd.xlane.f32.xlu0 %v973
      %v975 = vpop.xlane.xlu0 %974
      %v976 = vadd.f32 %v930, %v931
      %977 = vadd.xlane.f32.xlu0 %v976
      %v978 = vpop.xlane.xlu0 %977
      %v979 = vadd.f32 %v932, %v933
      %980 = vadd.xlane.f32.xlu0 %v979
      %v981 = vpop.xlane.xlu0 %980
      %v982 = vadd.f32 %v756, %v936
      %v983 = vadd.f32 %v757, %v939
      %v984 = vadd.f32 %v758, %v942
      %v985 = vadd.f32 %v759, %v945
      %v986 = vadd.f32 %v760, %v948
      %v987 = vadd.f32 %v761, %v951
      %v988 = vadd.f32 %v762, %v954
      %v989 = vadd.f32 %v763, %v957
      %v990 = vadd.f32 %v764, %v960
      %v991 = vadd.f32 %v765, %v963
      %v992 = vadd.f32 %v766, %v966
      %v993 = vadd.f32 %v767, %v969
      %v994 = vadd.f32 %v768, %v972
      %v995 = vadd.f32 %v769, %v975
      %v996 = vadd.f32 %v770, %v978
      %v997 = vadd.f32 %v771, %v981
      %s998 = scalar_lea.vmem %s335, 8
      %v999 = vld [vmem:[%s998] sm:$0xf]
      %v1002 = vunpack.c.l.s4 1983009808
      %v1003 = vunpack.c.0.s8 %v1002
      %v1004 = vlaneseq
      %v1005 = vshrl.u32 %v1004, 7
      %v1006 = vsub.s32 %v1003, %v1005
      %v1007 = vrot.slane %v999, %v1006
      %v1008 = vcombine.high %v1007, %v1007
      %v1010 = vsel %vm556, %v1007, 0
      %v1013 = vsel %vm556, %v1008, 0
      %1015 = vmatprep.subr.bf16.mxu0 %v1013
      %1016 = vmatpush1.bf16.msra.mxu0 %v1010
      %1017 = vmatprep.subr.bf16.mxu0 0
      %1018 = vmatpush1.bf16.msra.mxu0 0
      %1019 = vmatprep.subr.bf16.mxu0 0
      %1020 = vmatpush1.bf16.msra.mxu0 0
      %1021 = vmatprep.subr.bf16.mxu0 0
      %1022 = vmatpush1.bf16.msra.mxu0 0
      %1023 = vmatprep.subr.bf16.mxu0 0
      %1024 = vmatpush1.bf16.msra.mxu0 0
      %1025 = vmatprep.subr.bf16.mxu0 0
      %1026 = vmatpush1.bf16.msra.mxu0 0
      %1027 = vmatprep.subr.bf16.mxu0 0
      %1028 = vmatpush1.bf16.msra.mxu0 0
      %1029 = vmatprep.subr.bf16.mxu0 0
      %1030 = vmatpush1.bf16.msra.mxu0 0
      %1031 = vmatprep.subr.bf16.mxu0 0
      %1032 = vmatpush1.bf16.msra.mxu0 0
      %1033 = vmatprep.subr.bf16.mxu0 0
      %1034 = vmatpush1.bf16.msra.mxu0 0
      %1035 = vmatprep.subr.bf16.mxu0 0
      %1036 = vmatpush1.bf16.msra.mxu0 0
      %1037 = vmatprep.subr.bf16.mxu0 0
      %1038 = vmatpush1.bf16.msra.mxu0 0
      %1039 = vmatprep.subr.bf16.mxu0 0
      %1040 = vmatpush1.bf16.msra.mxu0 0
      %1041 = vmatprep.subr.bf16.mxu0 0
      %1042 = vmatpush1.bf16.msra.mxu0 0
      %1043 = vmatprep.subr.bf16.mxu0 0
      %1044 = vmatpush1.bf16.msra.mxu0 0
      %1045 = vmatprep.subr.bf16.mxu0 0
      %1046 = vmatpush1.bf16.msra.mxu0 0
      %1047 = vmatprep.mubr.bf16.mxu0 0
      %1048 = vmatmul.mubr.bf16.gmra.mrb[0].mxu0 %v533
      %v1049 = vpop.f32.mrb[0].mxu0
      %v1050 = vadd.f32 %v405, %v1049
      %v1051 = vpop.f32.mrb[0].mxu0
      %v1052 = vadd.f32 %v405, %v1051
      %v1053 = vpop.f32.mrb[0].mxu0
      %v1054 = vadd.f32 %v410, %v1053
      %v1055 = vpop.f32.mrb[0].mxu0
      %v1056 = vadd.f32 %v410, %v1055
      %1057 = vmatprep.mubr.bf16.mxu0 0
      %1058 = vmatmul.mubr.bf16.gmra.mrb[0].mxu0 %v536
      %v1059 = vpop.f32.mrb[0].mxu0
      %v1060 = vadd.f32 %v415, %v1059
      %v1061 = vpop.f32.mrb[0].mxu0
      %v1062 = vadd.f32 %v415, %v1061
      %v1063 = vpop.f32.mrb[0].mxu0
      %v1064 = vadd.f32 %v420, %v1063
      %v1065 = vpop.f32.mrb[0].mxu0
      %v1066 = vadd.f32 %v420, %v1065
      %1067 = vmatprep.mubr.bf16.mxu0 0
      %1068 = vmatmul.mubr.bf16.gmra.mrb[0].mxu0 %v539
      %v1069 = vpop.f32.mrb[0].mxu0
      %v1070 = vadd.f32 %v425, %v1069
      %v1071 = vpop.f32.mrb[0].mxu0
      %v1072 = vadd.f32 %v425, %v1071
      %v1073 = vpop.f32.mrb[0].mxu0
      %v1074 = vadd.f32 %v430, %v1073
      %v1075 = vpop.f32.mrb[0].mxu0
      %v1076 = vadd.f32 %v430, %v1075
      %1077 = vmatprep.mubr.bf16.mxu0 0
      %1078 = vmatmul.mubr.bf16.gmra.mrb[0].mxu0 %v542
      %v1079 = vpop.f32.mrb[0].mxu0
      %v1080 = vadd.f32 %v435, %v1079
      %v1081 = vpop.f32.mrb[0].mxu0
      %v1082 = vadd.f32 %v435, %v1081
      %v1083 = vpop.f32.mrb[0].mxu0
      %v1084 = vadd.f32 %v440, %v1083
      %v1085 = vpop.f32.mrb[0].mxu0
      %v1086 = vadd.f32 %v440, %v1085
      %1087 = vmatprep.mubr.bf16.mxu0 0
      %1088 = vmatmul.mubr.bf16.gmra.mrb[0].mxu0 %v545
      %v1089 = vpop.f32.mrb[0].mxu0
      %v1090 = vadd.f32 %v445, %v1089
      %v1091 = vpop.f32.mrb[0].mxu0
      %v1092 = vadd.f32 %v445, %v1091
      %v1093 = vpop.f32.mrb[0].mxu0
      %v1094 = vadd.f32 %v450, %v1093
      %v1095 = vpop.f32.mrb[0].mxu0
      %v1096 = vadd.f32 %v450, %v1095
      %1097 = vmatprep.mubr.bf16.mxu0 0
      %1098 = vmatmul.mubr.bf16.gmra.mrb[0].mxu0 %v548
      %v1099 = vpop.f32.mrb[0].mxu0
      %v1100 = vadd.f32 %v455, %v1099
      %v1101 = vpop.f32.mrb[0].mxu0
      %v1102 = vadd.f32 %v455, %v1101
      %v1103 = vpop.f32.mrb[0].mxu0
      %v1104 = vadd.f32 %v460, %v1103
      %v1105 = vpop.f32.mrb[0].mxu0
      %v1106 = vadd.f32 %v460, %v1105
      %1107 = vmatprep.mubr.bf16.mxu0 0
      %1108 = vmatmul.mubr.bf16.gmra.mrb[0].mxu0 %v551
      %v1109 = vpop.f32.mrb[0].mxu0
      %v1110 = vadd.f32 %v465, %v1109
      %v1111 = vpop.f32.mrb[0].mxu0
      %v1112 = vadd.f32 %v465, %v1111
      %v1113 = vpop.f32.mrb[0].mxu0
      %v1114 = vadd.f32 %v470, %v1113
      %v1115 = vpop.f32.mrb[0].mxu0
      %v1116 = vadd.f32 %v470, %v1115
      %1117 = vmatprep.mubr.bf16.mxu0 0
      %1118 = vmatmul.mubr.bf16.gmra.mrb[0].mxu0 %v554
      %v1119 = vpop.f32.mrb[0].mxu0
      %v1120 = vadd.f32 %v475, %v1119
      %v1121 = vpop.f32.mrb[0].mxu0
      %v1122 = vadd.f32 %v475, %v1121
      %v1123 = vpop.f32.mrb[0].mxu0
      %v1124 = vadd.f32 %v480, %v1123
      %v1125 = vpop.f32.mrb[0].mxu0
      %v1126 = vadd.f32 %v480, %v1125
      %1127 = vdwg.mxu0
      %v1128 = vmax.f32 %v1050, 0.0
      %v1129 = vmax.f32 %v1052, 0.0
      %v1130 = vmax.f32 %v1054, 0.0
      %v1131 = vmax.f32 %v1056, 0.0
      %v1132 = vmax.f32 %v1060, 0.0
      %v1133 = vmax.f32 %v1062, 0.0
      %v1134 = vmax.f32 %v1064, 0.0
      %v1135 = vmax.f32 %v1066, 0.0
      %v1136 = vmax.f32 %v1070, 0.0
      %v1137 = vmax.f32 %v1072, 0.0
      %v1138 = vmax.f32 %v1074, 0.0
      %v1139 = vmax.f32 %v1076, 0.0
      %v1140 = vmax.f32 %v1080, 0.0
      %v1141 = vmax.f32 %v1082, 0.0
      %v1142 = vmax.f32 %v1084, 0.0
      %v1143 = vmax.f32 %v1086, 0.0
      %v1144 = vmax.f32 %v1090, 0.0
      %v1145 = vmax.f32 %v1092, 0.0
      %v1146 = vmax.f32 %v1094, 0.0
      %v1147 = vmax.f32 %v1096, 0.0
      %v1148 = vmax.f32 %v1100, 0.0
      %v1149 = vmax.f32 %v1102, 0.0
      %v1150 = vmax.f32 %v1104, 0.0
      %v1151 = vmax.f32 %v1106, 0.0
      %v1152 = vmax.f32 %v1110, 0.0
      %v1153 = vmax.f32 %v1112, 0.0
      %v1154 = vmax.f32 %v1114, 0.0
      %v1155 = vmax.f32 %v1116, 0.0
      %v1156 = vmax.f32 %v1120, 0.0
      %v1157 = vmax.f32 %v1122, 0.0
      %v1158 = vmax.f32 %v1124, 0.0
      %v1159 = vmax.f32 %v1126, 0.0
      %v1160 = vadd.f32 %v1128, %v1129
      %1161 = vadd.xlane.f32.xlu0 %v1160
      %v1162 = vpop.xlane.xlu0 %1161
      %v1163 = vadd.f32 %v1130, %v1131
      %1164 = vadd.xlane.f32.xlu0 %v1163
      %v1165 = vpop.xlane.xlu0 %1164
      %v1166 = vadd.f32 %v1132, %v1133
      %1167 = vadd.xlane.f32.xlu0 %v1166
      %v1168 = vpop.xlane.xlu0 %1167
      %v1169 = vadd.f32 %v1134, %v1135
      %1170 = vadd.xlane.f32.xlu0 %v1169
      %v1171 = vpop.xlane.xlu0 %1170
      %v1172 = vadd.f32 %v1136, %v1137
      %1173 = vadd.xlane.f32.xlu0 %v1172
      %v1174 = vpop.xlane.xlu0 %1173
      %v1175 = vadd.f32 %v1138, %v1139
      %1176 = vadd.xlane.f32.xlu0 %v1175
      %v1177 = vpop.xlane.xlu0 %1176
      %v1178 = vadd.f32 %v1140, %v1141
      %1179 = vadd.xlane.f32.xlu0 %v1178
      %v1180 = vpop.xlane.xlu0 %1179
      %v1181 = vadd.f32 %v1142, %v1143
      %1182 = vadd.xlane.f32.xlu0 %v1181
      %v1183 = vpop.xlane.xlu0 %1182
      %v1184 = vadd.f32 %v1144, %v1145
      %1185 = vadd.xlane.f32.xlu0 %v1184
      %v1186 = vpop.xlane.xlu0 %1185
      %v1187 = vadd.f32 %v1146, %v1147
      %1188 = vadd.xlane.f32.xlu0 %v1187
      %v1189 = vpop.xlane.xlu0 %1188
      %v1190 = vadd.f32 %v1148, %v1149
      %1191 = vadd.xlane.f32.xlu0 %v1190
      %v1192 = vpop.xlane.xlu0 %1191
      %v1193 = vadd.f32 %v1150, %v1151
      %1194 = vadd.xlane.f32.xlu0 %v1193
      %v1195 = vpop.xlane.xlu0 %1194
      %v1196 = vadd.f32 %v1152, %v1153
      %1197 = vadd.xlane.f32.xlu0 %v1196
      %v1198 = vpop.xlane.xlu0 %1197
      %v1199 = vadd.f32 %v1154, %v1155
      %1200 = vadd.xlane.f32.xlu0 %v1199
      %v1201 = vpop.xlane.xlu0 %1200
      %v1202 = vadd.f32 %v1156, %v1157
      %1203 = vadd.xlane.f32.xlu0 %v1202
      %v1204 = vpop.xlane.xlu0 %1203
      %v1205 = vadd.f32 %v1158, %v1159
      %1206 = vadd.xlane.f32.xlu0 %v1205
      %v1207 = vpop.xlane.xlu0 %1206
      %v1208 = vadd.f32 %v982, %v1162
      %v1209 = vadd.f32 %v983, %v1165
      %v1210 = vadd.f32 %v984, %v1168
      %v1211 = vadd.f32 %v985, %v1171
      %v1212 = vadd.f32 %v986, %v1174
      %v1213 = vadd.f32 %v987, %v1177
      %v1214 = vadd.f32 %v988, %v1180
      %v1215 = vadd.f32 %v989, %v1183
      %v1216 = vadd.f32 %v990, %v1186
      %v1217 = vadd.f32 %v991, %v1189
      %v1218 = vadd.f32 %v992, %v1192
      %v1219 = vadd.f32 %v993, %v1195
      %v1220 = vadd.f32 %v994, %v1198
      %v1221 = vadd.f32 %v995, %v1201
      %v1222 = vadd.f32 %v996, %v1204
      %v1223 = vadd.f32 %v997, %v1207
      %s1224 = scalar_lea.vmem %s335, 12
      %v1225 = vld [vmem:[%s1224] sm:$0xf]
      %v1228 = vunpack.c.l.s4 1983009808
      %v1229 = vunpack.c.0.s8 %v1228
      %v1230 = vlaneseq
      %v1231 = vshrl.u32 %v1230, 7
      %v1232 = vsub.s32 %v1229, %v1231
      %v1233 = vrot.slane %v1225, %v1232
      %v1234 = vcombine.high %v1233, %v1233
      %v1236 = vsel %vm556, %v1233, 0
      %v1239 = vsel %vm556, %v1234, 0
      %1241 = vmatprep.subr.bf16.mxu0 %v1239
      %1242 = vmatpush1.bf16.msra.mxu0 %v1236
      %1243 = vmatprep.subr.bf16.mxu0 0
      %1244 = vmatpush1.bf16.msra.mxu0 0
      %1245 = vmatprep.subr.bf16.mxu0 0
      %1246 = vmatpush1.bf16.msra.mxu0 0
      %1247 = vmatprep.subr.bf16.mxu0 0
      %1248 = vmatpush1.bf16.msra.mxu0 0
      %1249 = vmatprep.subr.bf16.mxu0 0
      %1250 = vmatpush1.bf16.msra.mxu0 0
      %1251 = vmatprep.subr.bf16.mxu0 0
      %1252 = vmatpush1.bf16.msra.mxu0 0
      %1253 = vmatprep.subr.bf16.mxu0 0
      %1254 = vmatpush1.bf16.msra.mxu0 0
      %1255 = vmatprep.subr.bf16.mxu0 0
      %1256 = vmatpush1.bf16.msra.mxu0 0
      %1257 = vmatprep.subr.bf16.mxu0 0
      %1258 = vmatpush1.bf16.msra.mxu0 0
      %1259 = vmatprep.subr.bf16.mxu0 0
      %1260 = vmatpush1.bf16.msra.mxu0 0
      %1261 = vmatprep.subr.bf16.mxu0 0
      %1262 = vmatpush1.bf16.msra.mxu0 0
      %1263 = vmatprep.subr.bf16.mxu0 0
      %1264 = vmatpush1.bf16.msra.mxu0 0
      %1265 = vmatprep.subr.bf16.mxu0 0
      %1266 = vmatpush1.bf16.msra.mxu0 0
      %1267 = vmatprep.subr.bf16.mxu0 0
      %1268 = vmatpush1.bf16.msra.mxu0 0
      %1269 = vmatprep.subr.bf16.mxu0 0
      %1270 = vmatpush1.bf16.msra.mxu0 0
      %1271 = vmatprep.subr.bf16.mxu0 0
      %1272 = vmatpush1.bf16.msra.mxu0 0
      %1273 = vmatprep.mubr.bf16.mxu0 0
      %1274 = vmatmul.mubr.bf16.gmra.mrb[0].mxu0 %v533
      %v1275 = vpop.f32.mrb[0].mxu0
      %v1276 = vadd.f32 %v405, %v1275
      %v1277 = vpop.f32.mrb[0].mxu0
      %v1278 = vadd.f32 %v405, %v1277
      %v1279 = vpop.f32.mrb[0].mxu0
      %v1280 = vadd.f32 %v410, %v1279
      %v1281 = vpop.f32.mrb[0].mxu0
      %v1282 = vadd.f32 %v410, %v1281
      %1283 = vmatprep.mubr.bf16.mxu0 0
      %1284 = vmatmul.mubr.bf16.gmra.mrb[0].mxu0 %v536
      %v1285 = vpop.f32.mrb[0].mxu0
      %v1286 = vadd.f32 %v415, %v1285
      %v1287 = vpop.f32.mrb[0].mxu0
      %v1288 = vadd.f32 %v415, %v1287
      %v1289 = vpop.f32.mrb[0].mxu0
      %v1290 = vadd.f32 %v420, %v1289
      %v1291 = vpop.f32.mrb[0].mxu0
      %v1292 = vadd.f32 %v420, %v1291
      %1293 = vmatprep.mubr.bf16.mxu0 0
      %1294 = vmatmul.mubr.bf16.gmra.mrb[0].mxu0 %v539
      %v1295 = vpop.f32.mrb[0].mxu0
      %v1296 = vadd.f32 %v425, %v1295
      %v1297 = vpop.f32.mrb[0].mxu0
      %v1298 = vadd.f32 %v425, %v1297
      %v1299 = vpop.f32.mrb[0].mxu0
      %v1300 = vadd.f32 %v430, %v1299
      %v1301 = vpop.f32.mrb[0].mxu0
      %v1302 = vadd.f32 %v430, %v1301
      %1303 = vmatprep.mubr.bf16.mxu0 0
      %1304 = vmatmul.mubr.bf16.gmra.mrb[0].mxu0 %v542
      %v1305 = vpop.f32.mrb[0].mxu0
      %v1306 = vadd.f32 %v435, %v1305
      %v1307 = vpop.f32.mrb[0].mxu0
      %v1308 = vadd.f32 %v435, %v1307
      %v1309 = vpop.f32.mrb[0].mxu0
      %v1310 = vadd.f32 %v440, %v1309
      %v1311 = vpop.f32.mrb[0].mxu0
      %v1312 = vadd.f32 %v440, %v1311
      %1313 = vmatprep.mubr.bf16.mxu0 0
      %1314 = vmatmul.mubr.bf16.gmra.mrb[0].mxu0 %v545
      %v1315 = vpop.f32.mrb[0].mxu0
      %v1316 = vadd.f32 %v445, %v1315
      %v1317 = vpop.f32.mrb[0].mxu0
      %v1318 = vadd.f32 %v445, %v1317
      %v1319 = vpop.f32.mrb[0].mxu0
      %v1320 = vadd.f32 %v450, %v1319
      %v1321 = vpop.f32.mrb[0].mxu0
      %v1322 = vadd.f32 %v450, %v1321
      %1323 = vmatprep.mubr.bf16.mxu0 0
      %1324 = vmatmul.mubr.bf16.gmra.mrb[0].mxu0 %v548
      %v1325 = vpop.f32.mrb[0].mxu0
      %v1326 = vadd.f32 %v455, %v1325
      %v1327 = vpop.f32.mrb[0].mxu0
      %v1328 = vadd.f32 %v455, %v1327
      %v1329 = vpop.f32.mrb[0].mxu0
      %v1330 = vadd.f32 %v460, %v1329
      %v1331 = vpop.f32.mrb[0].mxu0
      %v1332 = vadd.f32 %v460, %v1331
      %1333 = vmatprep.mubr.bf16.mxu0 0
      %1334 = vmatmul.mubr.bf16.gmra.mrb[0].mxu0 %v551
      %v1335 = vpop.f32.mrb[0].mxu0
      %v1336 = vadd.f32 %v465, %v1335
      %v1337 = vpop.f32.mrb[0].mxu0
      %v1338 = vadd.f32 %v465, %v1337
      %v1339 = vpop.f32.mrb[0].mxu0
      %v1340 = vadd.f32 %v470, %v1339
      %v1341 = vpop.f32.mrb[0].mxu0
      %v1342 = vadd.f32 %v470, %v1341
      %1343 = vmatprep.mubr.bf16.mxu0 0
      %1344 = vmatmul.mubr.bf16.gmra.mrb[0].mxu0 %v554
      %v1345 = vpop.f32.mrb[0].mxu0
      %v1346 = vadd.f32 %v475, %v1345
      %v1347 = vpop.f32.mrb[0].mxu0
      %v1348 = vadd.f32 %v475, %v1347
      %v1349 = vpop.f32.mrb[0].mxu0
      %v1350 = vadd.f32 %v480, %v1349
      %v1351 = vpop.f32.mrb[0].mxu0
      %v1352 = vadd.f32 %v480, %v1351
      %1353 = vdwg.mxu0
      %v1354 = vmax.f32 %v1276, 0.0
      %v1355 = vmax.f32 %v1278, 0.0
      %v1356 = vmax.f32 %v1280, 0.0
      %v1357 = vmax.f32 %v1282, 0.0
      %v1358 = vmax.f32 %v1286, 0.0
      %v1359 = vmax.f32 %v1288, 0.0
      %v1360 = vmax.f32 %v1290, 0.0
      %v1361 = vmax.f32 %v1292, 0.0
      %v1362 = vmax.f32 %v1296, 0.0
      %v1363 = vmax.f32 %v1298, 0.0
      %v1364 = vmax.f32 %v1300, 0.0
      %v1365 = vmax.f32 %v1302, 0.0
      %v1366 = vmax.f32 %v1306, 0.0
      %v1367 = vmax.f32 %v1308, 0.0
      %v1368 = vmax.f32 %v1310, 0.0
      %v1369 = vmax.f32 %v1312, 0.0
      %v1370 = vmax.f32 %v1316, 0.0
      %v1371 = vmax.f32 %v1318, 0.0
      %v1372 = vmax.f32 %v1320, 0.0
      %v1373 = vmax.f32 %v1322, 0.0
      %v1374 = vmax.f32 %v1326, 0.0
      %v1375 = vmax.f32 %v1328, 0.0
      %v1376 = vmax.f32 %v1330, 0.0
      %v1377 = vmax.f32 %v1332, 0.0
      %v1378 = vmax.f32 %v1336, 0.0
      %v1379 = vmax.f32 %v1338, 0.0
      %v1380 = vmax.f32 %v1340, 0.0
      %v1381 = vmax.f32 %v1342, 0.0
      %v1382 = vmax.f32 %v1346, 0.0
      %v1383 = vmax.f32 %v1348, 0.0
      %v1384 = vmax.f32 %v1350, 0.0
      %v1385 = vmax.f32 %v1352, 0.0
      %v1386 = vadd.f32 %v1354, %v1355
      %1387 = vadd.xlane.f32.xlu0 %v1386
      %v1388 = vpop.xlane.xlu0 %1387
      %v1389 = vadd.f32 %v1356, %v1357
      %1390 = vadd.xlane.f32.xlu0 %v1389
      %v1391 = vpop.xlane.xlu0 %1390
      %v1392 = vadd.f32 %v1358, %v1359
      %1393 = vadd.xlane.f32.xlu0 %v1392
      %v1394 = vpop.xlane.xlu0 %1393
      %v1395 = vadd.f32 %v1360, %v1361
      %1396 = vadd.xlane.f32.xlu0 %v1395
      %v1397 = vpop.xlane.xlu0 %1396
      %v1398 = vadd.f32 %v1362, %v1363
      %1399 = vadd.xlane.f32.xlu0 %v1398
      %v1400 = vpop.xlane.xlu0 %1399
      %v1401 = vadd.f32 %v1364, %v1365
      %1402 = vadd.xlane.f32.xlu0 %v1401
      %v1403 = vpop.xlane.xlu0 %1402
      %v1404 = vadd.f32 %v1366, %v1367
      %1405 = vadd.xlane.f32.xlu0 %v1404
      %v1406 = vpop.xlane.xlu0 %1405
      %v1407 = vadd.f32 %v1368, %v1369
      %1408 = vadd.xlane.f32.xlu0 %v1407
      %v1409 = vpop.xlane.xlu0 %1408
      %v1410 = vadd.f32 %v1370, %v1371
      %1411 = vadd.xlane.f32.xlu0 %v1410
      %v1412 = vpop.xlane.xlu0 %1411
      %v1413 = vadd.f32 %v1372, %v1373
      %1414 = vadd.xlane.f32.xlu0 %v1413
      %v1415 = vpop.xlane.xlu0 %1414
      %v1416 = vadd.f32 %v1374, %v1375
      %1417 = vadd.xlane.f32.xlu0 %v1416
      %v1418 = vpop.xlane.xlu0 %1417
      %v1419 = vadd.f32 %v1376, %v1377
      %1420 = vadd.xlane.f32.xlu0 %v1419
      %v1421 = vpop.xlane.xlu0 %1420
      %v1422 = vadd.f32 %v1378, %v1379
      %1423 = vadd.xlane.f32.xlu0 %v1422
      %v1424 = vpop.xlane.xlu0 %1423
      %v1425 = vadd.f32 %v1380, %v1381
      %1426 = vadd.xlane.f32.xlu0 %v1425
      %v1427 = vpop.xlane.xlu0 %1426
      %v1428 = vadd.f32 %v1382, %v1383
      %1429 = vadd.xlane.f32.xlu0 %v1428
      %v1430 = vpop.xlane.xlu0 %1429
      %v1431 = vadd.f32 %v1384, %v1385
      %1432 = vadd.xlane.f32.xlu0 %v1431
      %v1433 = vpop.xlane.xlu0 %1432
      %v1434 = vadd.f32 %v1208, %v1388
      %v1435 = vadd.f32 %v1209, %v1391
      %v1436 = vadd.f32 %v1210, %v1394
      %v1437 = vadd.f32 %v1211, %v1397
      %v1438 = vadd.f32 %v1212, %v1400
      %v1439 = vadd.f32 %v1213, %v1403
      %v1440 = vadd.f32 %v1214, %v1406
      %v1441 = vadd.f32 %v1215, %v1409
      %v1442 = vadd.f32 %v1216, %v1412
      %v1443 = vadd.f32 %v1217, %v1415
      %v1444 = vadd.f32 %v1218, %v1418
      %v1445 = vadd.f32 %v1219, %v1421
      %v1446 = vadd.f32 %v1220, %v1424
      %v1447 = vadd.f32 %v1221, %v1427
      %v1448 = vadd.f32 %v1222, %v1430
      %v1449 = vadd.f32 %v1223, %v1433
      %v1450 = vld [vmem:[%s358] sm:$0x1]
      %v1467 = vlaneseq
      %v1468 = vand.u32 %v1467, 127
      %v1469 = vlaneseq
      %v1470 = vshrl.u32 %v1469, 7
      %v1471 = vsub.s32 %v1468, %v1470
      %v1472 = vrot.slane %v1434, %v1471
      %v1473 = vadd.s32 %v1468, 4294967288
      %v1474 = vlaneseq
      %v1475 = vshrl.u32 %v1474, 7
      %v1476 = vsub.s32 %v1473, %v1475
      %v1477 = vrot.slane %v1435, %v1476
      %vm1478 = vcmask 130112
      %v1479 = vsel %vm1478, %v1477, %v1472
      %v1480 = vadd.s32 %v1468, 4294967280
      %v1481 = vlaneseq
      %v1482 = vshrl.u32 %v1481, 7
      %v1483 = vsub.s32 %v1480, %v1482
      %v1484 = vrot.slane %v1436, %v1483
      %vm1485 = vcmask 195712
      %v1486 = vsel %vm1485, %v1484, %v1479
      %v1487 = vadd.s32 %v1468, 4294967272
      %v1488 = vlaneseq
      %v1489 = vshrl.u32 %v1488, 7
      %v1490 = vsub.s32 %v1487, %v1489
      %v1491 = vrot.slane %v1437, %v1490
      %vm1492 = vcmask 261312
      %v1493 = vsel %vm1492, %v1491, %v1486
      %v1494 = vadd.s32 %v1468, 4294967264
      %v1495 = vlaneseq
      %v1496 = vshrl.u32 %v1495, 7
      %v1497 = vsub.s32 %v1494, %v1496
      %v1498 = vrot.slane %v1438, %v1497
      %vm1499 = vcmask 326912
      %v1500 = vsel %vm1499, %v1498, %v1493
      %v1501 = vadd.s32 %v1468, 4294967256
      %v1502 = vlaneseq
      %v1503 = vshrl.u32 %v1502, 7
      %v1504 = vsub.s32 %v1501, %v1503
      %v1505 = vrot.slane %v1439, %v1504
      %vm1506 = vcmask 392512
      %v1507 = vsel %vm1506, %v1505, %v1500
      %v1508 = vadd.s32 %v1468, 4294967248
      %v1509 = vlaneseq
      %v1510 = vshrl.u32 %v1509, 7
      %v1511 = vsub.s32 %v1508, %v1510
      %v1512 = vrot.slane %v1440, %v1511
      %vm1513 = vcmask 458112
      %v1514 = vsel %vm1513, %v1512, %v1507
      %v1515 = vadd.s32 %v1468, 4294967240
      %v1516 = vlaneseq
      %v1517 = vshrl.u32 %v1516, 7
      %v1518 = vsub.s32 %v1515, %v1517
      %v1519 = vrot.slane %v1441, %v1518
      %vm1520 = vcmask 523712
      %v1521 = vsel %vm1520, %v1519, %v1514
      %v1522 = vadd.s32 %v1468, 4294967232
      %v1523 = vlaneseq
      %v1524 = vshrl.u32 %v1523, 7
      %v1525 = vsub.s32 %v1522, %v1524
      %v1526 = vrot.slane %v1442, %v1525
      %vm1527 = vcmask 589312
      %v1528 = vsel %vm1527, %v1526, %v1521
      %v1529 = vadd.s32 %v1468, 4294967224
      %v1530 = vlaneseq
      %v1531 = vshrl.u32 %v1530, 7
      %v1532 = vsub.s32 %v1529, %v1531
      %v1533 = vrot.slane %v1443, %v1532
      %vm1534 = vcmask 654912
      %v1535 = vsel %vm1534, %v1533, %v1528
      %v1536 = vadd.s32 %v1468, 4294967216
      %v1537 = vlaneseq
      %v1538 = vshrl.u32 %v1537, 7
      %v1539 = vsub.s32 %v1536, %v1538
      %v1540 = vrot.slane %v1444, %v1539
      %vm1541 = vcmask 720512
      %v1542 = vsel %vm1541, %v1540, %v1535
      %v1543 = vadd.s32 %v1468, 4294967208
      %v1544 = vlaneseq
      %v1545 = vshrl.u32 %v1544, 7
      %v1546 = vsub.s32 %v1543, %v1545
      %v1547 = vrot.slane %v1445, %v1546
      %vm1548 = vcmask 786112
      %v1549 = vsel %vm1548, %v1547, %v1542
      %v1550 = vadd.s32 %v1468, 4294967200
      %v1551 = vlaneseq
      %v1552 = vshrl.u32 %v1551, 7
      %v1553 = vsub.s32 %v1550, %v1552
      %v1554 = vrot.slane %v1446, %v1553
      %vm1555 = vcmask 851712
      %v1556 = vsel %vm1555, %v1554, %v1549
      %v1557 = vadd.s32 %v1468, 4294967192
      %v1558 = vlaneseq
      %v1559 = vshrl.u32 %v1558, 7
      %v1560 = vsub.s32 %v1557, %v1559
      %v1561 = vrot.slane %v1447, %v1560
      %vm1562 = vcmask 917312
      %v1563 = vsel %vm1562, %v1561, %v1556
      %v1564 = vadd.s32 %v1468, 4294967184
      %v1565 = vlaneseq
      %v1566 = vshrl.u32 %v1565, 7
      %v1567 = vsub.s32 %v1564, %v1566
      %v1568 = vrot.slane %v1448, %v1567
      %vm1569 = vcmask 982912
      %v1570 = vsel %vm1569, %v1568, %v1563
      %v1571 = vadd.s32 %v1468, 4294967176
      %v1572 = vlaneseq
      %v1573 = vshrl.u32 %v1572, 7
      %v1574 = vsub.s32 %v1571, %v1573
      %v1575 = vrot.slane %v1449, %v1574
      %vm1576 = vcmask 1048512
      %v1577 = vsel %vm1576, %v1575, %v1570
      %v1579 = vadd.f32 %v1450, %v1577
      %1580 = vst [vmem:[%s358] sm:$0x1] %v1579
      %s1581 = sadd.s32 0, 8
      %s1582 = smul.addr %s1581, 2
      %s1583 = scalar_lea.vmem %s335, %s1582
      %v1584 = vld [vmem:[%s1583] sm:$0xf]
      %v1587 = vunpack.c.l.s4 1983009808
      %v1588 = vunpack.c.0.s8 %v1587
      %v1589 = vlaneseq
      %v1590 = vshrl.u32 %v1589, 7
      %v1591 = vsub.s32 %v1588, %v1590
      %v1592 = vrot.slane %v1584, %v1591
      %v1593 = vcombine.high %v1592, %v1592
      %v1595 = vsel %vm556, %v1592, 0
      %v1598 = vsel %vm556, %v1593, 0
      %1600 = vmatprep.subr.bf16.mxu0 %v1598
      %1601 = vmatpush1.bf16.msra.mxu0 %v1595
      %1602 = vmatprep.subr.bf16.mxu0 0
      %1603 = vmatpush1.bf16.msra.mxu0 0
      %1604 = vmatprep.subr.bf16.mxu0 0
      %1605 = vmatpush1.bf16.msra.mxu0 0
      %1606 = vmatprep.subr.bf16.mxu0 0
      %1607 = vmatpush1.bf16.msra.mxu0 0
      %1608 = vmatprep.subr.bf16.mxu0 0
      %1609 = vmatpush1.bf16.msra.mxu0 0
      %1610 = vmatprep.subr.bf16.mxu0 0
      %1611 = vmatpush1.bf16.msra.mxu0 0
      %1612 = vmatprep.subr.bf16.mxu0 0
      %1613 = vmatpush1.bf16.msra.mxu0 0
      %1614 = vmatprep.subr.bf16.mxu0 0
      %1615 = vmatpush1.bf16.msra.mxu0 0
      %1616 = vmatprep.subr.bf16.mxu0 0
      %1617 = vmatpush1.bf16.msra.mxu0 0
      %1618 = vmatprep.subr.bf16.mxu0 0
      %1619 = vmatpush1.bf16.msra.mxu0 0
      %1620 = vmatprep.subr.bf16.mxu0 0
      %1621 = vmatpush1.bf16.msra.mxu0 0
      %1622 = vmatprep.subr.bf16.mxu0 0
      %1623 = vmatpush1.bf16.msra.mxu0 0
      %1624 = vmatprep.subr.bf16.mxu0 0
      %1625 = vmatpush1.bf16.msra.mxu0 0
      %1626 = vmatprep.subr.bf16.mxu0 0
      %1627 = vmatpush1.bf16.msra.mxu0 0
      %1628 = vmatprep.subr.bf16.mxu0 0
      %1629 = vmatpush1.bf16.msra.mxu0 0
      %1630 = vmatprep.subr.bf16.mxu0 0
      %1631 = vmatpush1.bf16.msra.mxu0 0
      %1632 = vmatprep.mubr.bf16.mxu0 0
      %1633 = vmatmul.mubr.bf16.gmra.mrb[0].mxu0 %v533
      %v1634 = vpop.f32.mrb[0].mxu0
      %v1635 = vadd.f32 %v405, %v1634
      %v1636 = vpop.f32.mrb[0].mxu0
      %v1637 = vadd.f32 %v405, %v1636
      %v1638 = vpop.f32.mrb[0].mxu0
      %v1639 = vadd.f32 %v410, %v1638
      %v1640 = vpop.f32.mrb[0].mxu0
      %v1641 = vadd.f32 %v410, %v1640
      %1642 = vmatprep.mubr.bf16.mxu0 0
      %1643 = vmatmul.mubr.bf16.gmra.mrb[0].mxu0 %v536
      %v1644 = vpop.f32.mrb[0].mxu0
      %v1645 = vadd.f32 %v415, %v1644
      %v1646 = vpop.f32.mrb[0].mxu0
      %v1647 = vadd.f32 %v415, %v1646
      %v1648 = vpop.f32.mrb[0].mxu0
      %v1649 = vadd.f32 %v420, %v1648
      %v1650 = vpop.f32.mrb[0].mxu0
      %v1651 = vadd.f32 %v420, %v1650
      %1652 = vmatprep.mubr.bf16.mxu0 0
      %1653 = vmatmul.mubr.bf16.gmra.mrb[0].mxu0 %v539
      %v1654 = vpop.f32.mrb[0].mxu0
      %v1655 = vadd.f32 %v425, %v1654
      %v1656 = vpop.f32.mrb[0].mxu0
      %v1657 = vadd.f32 %v425, %v1656
      %v1658 = vpop.f32.mrb[0].mxu0
      %v1659 = vadd.f32 %v430, %v1658
      %v1660 = vpop.f32.mrb[0].mxu0
      %v1661 = vadd.f32 %v430, %v1660
      %1662 = vmatprep.mubr.bf16.mxu0 0
      %1663 = vmatmul.mubr.bf16.gmra.mrb[0].mxu0 %v542
      %v1664 = vpop.f32.mrb[0].mxu0
      %v1665 = vadd.f32 %v435, %v1664
      %v1666 = vpop.f32.mrb[0].mxu0
      %v1667 = vadd.f32 %v435, %v1666
      %v1668 = vpop.f32.mrb[0].mxu0
      %v1669 = vadd.f32 %v440, %v1668
      %v1670 = vpop.f32.mrb[0].mxu0
      %v1671 = vadd.f32 %v440, %v1670
      %1672 = vmatprep.mubr.bf16.mxu0 0
      %1673 = vmatmul.mubr.bf16.gmra.mrb[0].mxu0 %v545
      %v1674 = vpop.f32.mrb[0].mxu0
      %v1675 = vadd.f32 %v445, %v1674
      %v1676 = vpop.f32.mrb[0].mxu0
      %v1677 = vadd.f32 %v445, %v1676
      %v1678 = vpop.f32.mrb[0].mxu0
      %v1679 = vadd.f32 %v450, %v1678
      %v1680 = vpop.f32.mrb[0].mxu0
      %v1681 = vadd.f32 %v450, %v1680
      %1682 = vmatprep.mubr.bf16.mxu0 0
      %1683 = vmatmul.mubr.bf16.gmra.mrb[0].mxu0 %v548
      %v1684 = vpop.f32.mrb[0].mxu0
      %v1685 = vadd.f32 %v455, %v1684
      %v1686 = vpop.f32.mrb[0].mxu0
      %v1687 = vadd.f32 %v455, %v1686
      %v1688 = vpop.f32.mrb[0].mxu0
      %v1689 = vadd.f32 %v460, %v1688
      %v1690 = vpop.f32.mrb[0].mxu0
      %v1691 = vadd.f32 %v460, %v1690
      %1692 = vmatprep.mubr.bf16.mxu0 0
      %1693 = vmatmul.mubr.bf16.gmra.mrb[0].mxu0 %v551
      %v1694 = vpop.f32.mrb[0].mxu0
      %v1695 = vadd.f32 %v465, %v1694
      %v1696 = vpop.f32.mrb[0].mxu0
      %v1697 = vadd.f32 %v465, %v1696
      %v1698 = vpop.f32.mrb[0].mxu0
      %v1699 = vadd.f32 %v470, %v1698
      %v1700 = vpop.f32.mrb[0].mxu0
      %v1701 = vadd.f32 %v470, %v1700
      %1702 = vmatprep.mubr.bf16.mxu0 0
      %1703 = vmatmul.mubr.bf16.gmra.mrb[0].mxu0 %v554
      %v1704 = vpop.f32.mrb[0].mxu0
      %v1705 = vadd.f32 %v475, %v1704
      %v1706 = vpop.f32.mrb[0].mxu0
      %v1707 = vadd.f32 %v475, %v1706
      %v1708 = vpop.f32.mrb[0].mxu0
      %v1709 = vadd.f32 %v480, %v1708
      %v1710 = vpop.f32.mrb[0].mxu0
      %v1711 = vadd.f32 %v480, %v1710
      %1712 = vdwg.mxu0
      %v1713 = vmax.f32 %v1635, 0.0
      %v1714 = vmax.f32 %v1637, 0.0
      %v1715 = vmax.f32 %v1639, 0.0
      %v1716 = vmax.f32 %v1641, 0.0
      %v1717 = vmax.f32 %v1645, 0.0
      %v1718 = vmax.f32 %v1647, 0.0
      %v1719 = vmax.f32 %v1649, 0.0
      %v1720 = vmax.f32 %v1651, 0.0
      %v1721 = vmax.f32 %v1655, 0.0
      %v1722 = vmax.f32 %v1657, 0.0
      %v1723 = vmax.f32 %v1659, 0.0
      %v1724 = vmax.f32 %v1661, 0.0
      %v1725 = vmax.f32 %v1665, 0.0
      %v1726 = vmax.f32 %v1667, 0.0
      %v1727 = vmax.f32 %v1669, 0.0
      %v1728 = vmax.f32 %v1671, 0.0
      %v1729 = vmax.f32 %v1675, 0.0
      %v1730 = vmax.f32 %v1677, 0.0
      %v1731 = vmax.f32 %v1679, 0.0
      %v1732 = vmax.f32 %v1681, 0.0
      %v1733 = vmax.f32 %v1685, 0.0
      %v1734 = vmax.f32 %v1687, 0.0
      %v1735 = vmax.f32 %v1689, 0.0
      %v1736 = vmax.f32 %v1691, 0.0
      %v1737 = vmax.f32 %v1695, 0.0
      %v1738 = vmax.f32 %v1697, 0.0
      %v1739 = vmax.f32 %v1699, 0.0
      %v1740 = vmax.f32 %v1701, 0.0
      %v1741 = vmax.f32 %v1705, 0.0
      %v1742 = vmax.f32 %v1707, 0.0
      %v1743 = vmax.f32 %v1709, 0.0
      %v1744 = vmax.f32 %v1711, 0.0
      %v1745 = vadd.f32 %v1713, %v1714
      %1746 = vadd.xlane.f32.xlu0 %v1745
      %v1747 = vpop.xlane.xlu0 %1746
      %v1748 = vadd.f32 %v1715, %v1716
      %1749 = vadd.xlane.f32.xlu0 %v1748
      %v1750 = vpop.xlane.xlu0 %1749
      %v1751 = vadd.f32 %v1717, %v1718
      %1752 = vadd.xlane.f32.xlu0 %v1751
      %v1753 = vpop.xlane.xlu0 %1752
      %v1754 = vadd.f32 %v1719, %v1720
      %1755 = vadd.xlane.f32.xlu0 %v1754
      %v1756 = vpop.xlane.xlu0 %1755
      %v1757 = vadd.f32 %v1721, %v1722
      %1758 = vadd.xlane.f32.xlu0 %v1757
      %v1759 = vpop.xlane.xlu0 %1758
      %v1760 = vadd.f32 %v1723, %v1724
      %1761 = vadd.xlane.f32.xlu0 %v1760
      %v1762 = vpop.xlane.xlu0 %1761
      %v1763 = vadd.f32 %v1725, %v1726
      %1764 = vadd.xlane.f32.xlu0 %v1763
      %v1765 = vpop.xlane.xlu0 %1764
      %v1766 = vadd.f32 %v1727, %v1728
      %1767 = vadd.xlane.f32.xlu0 %v1766
      %v1768 = vpop.xlane.xlu0 %1767
      %v1769 = vadd.f32 %v1729, %v1730
      %1770 = vadd.xlane.f32.xlu0 %v1769
      %v1771 = vpop.xlane.xlu0 %1770
      %v1772 = vadd.f32 %v1731, %v1732
      %1773 = vadd.xlane.f32.xlu0 %v1772
      %v1774 = vpop.xlane.xlu0 %1773
      %v1775 = vadd.f32 %v1733, %v1734
      %1776 = vadd.xlane.f32.xlu0 %v1775
      %v1777 = vpop.xlane.xlu0 %1776
      %v1778 = vadd.f32 %v1735, %v1736
      %1779 = vadd.xlane.f32.xlu0 %v1778
      %v1780 = vpop.xlane.xlu0 %1779
      %v1781 = vadd.f32 %v1737, %v1738
      %1782 = vadd.xlane.f32.xlu0 %v1781
      %v1783 = vpop.xlane.xlu0 %1782
      %v1784 = vadd.f32 %v1739, %v1740
      %1785 = vadd.xlane.f32.xlu0 %v1784
      %v1786 = vpop.xlane.xlu0 %1785
      %v1787 = vadd.f32 %v1741, %v1742
      %1788 = vadd.xlane.f32.xlu0 %v1787
      %v1789 = vpop.xlane.xlu0 %1788
      %v1790 = vadd.f32 %v1743, %v1744
      %1791 = vadd.xlane.f32.xlu0 %v1790
      %v1792 = vpop.xlane.xlu0 %1791
      %v1793 = vadd.f32 %v1747, 0.0
      %v1794 = vadd.f32 %v1750, 0.0
      %v1795 = vadd.f32 %v1753, 0.0
      %v1796 = vadd.f32 %v1756, 0.0
      %v1797 = vadd.f32 %v1759, 0.0
      %v1798 = vadd.f32 %v1762, 0.0
      %v1799 = vadd.f32 %v1765, 0.0
      %v1800 = vadd.f32 %v1768, 0.0
      %v1801 = vadd.f32 %v1771, 0.0
      %v1802 = vadd.f32 %v1774, 0.0
      %v1803 = vadd.f32 %v1777, 0.0
      %v1804 = vadd.f32 %v1780, 0.0
      %v1805 = vadd.f32 %v1783, 0.0
      %v1806 = vadd.f32 %v1786, 0.0
      %v1807 = vadd.f32 %v1789, 0.0
      %v1808 = vadd.f32 %v1792, 0.0
      %s1809 = sadd.s32 2, 8
      %s1810 = smul.addr %s1809, 2
      %s1811 = scalar_lea.vmem %s335, %s1810
      %v1812 = vld [vmem:[%s1811] sm:$0xf]
      %v1815 = vunpack.c.l.s4 1983009808
      %v1816 = vunpack.c.0.s8 %v1815
      %v1817 = vlaneseq
      %v1818 = vshrl.u32 %v1817, 7
      %v1819 = vsub.s32 %v1816, %v1818
      %v1820 = vrot.slane %v1812, %v1819
      %v1821 = vcombine.high %v1820, %v1820
      %v1823 = vsel %vm556, %v1820, 0
      %v1826 = vsel %vm556, %v1821, 0
      %1828 = vmatprep.subr.bf16.mxu0 %v1826
      %1829 = vmatpush1.bf16.msra.mxu0 %v1823
      %1830 = vmatprep.subr.bf16.mxu0 0
      %1831 = vmatpush1.bf16.msra.mxu0 0
      %1832 = vmatprep.subr.bf16.mxu0 0
      %1833 = vmatpush1.bf16.msra.mxu0 0
      %1834 = vmatprep.subr.bf16.mxu0 0
      %1835 = vmatpush1.bf16.msra.mxu0 0
      %1836 = vmatprep.subr.bf16.mxu0 0
      %1837 = vmatpush1.bf16.msra.mxu0 0
      %1838 = vmatprep.subr.bf16.mxu0 0
      %1839 = vmatpush1.bf16.msra.mxu0 0
      %1840 = vmatprep.subr.bf16.mxu0 0
      %1841 = vmatpush1.bf16.msra.mxu0 0
      %1842 = vmatprep.subr.bf16.mxu0 0
      %1843 = vmatpush1.bf16.msra.mxu0 0
      %1844 = vmatprep.subr.bf16.mxu0 0
      %1845 = vmatpush1.bf16.msra.mxu0 0
      %1846 = vmatprep.subr.bf16.mxu0 0
      %1847 = vmatpush1.bf16.msra.mxu0 0
      %1848 = vmatprep.subr.bf16.mxu0 0
      %1849 = vmatpush1.bf16.msra.mxu0 0
      %1850 = vmatprep.subr.bf16.mxu0 0
      %1851 = vmatpush1.bf16.msra.mxu0 0
      %1852 = vmatprep.subr.bf16.mxu0 0
      %1853 = vmatpush1.bf16.msra.mxu0 0
      %1854 = vmatprep.subr.bf16.mxu0 0
      %1855 = vmatpush1.bf16.msra.mxu0 0
      %1856 = vmatprep.subr.bf16.mxu0 0
      %1857 = vmatpush1.bf16.msra.mxu0 0
      %1858 = vmatprep.subr.bf16.mxu0 0
      %1859 = vmatpush1.bf16.msra.mxu0 0
      %1860 = vmatprep.mubr.bf16.mxu0 0
      %1861 = vmatmul.mubr.bf16.gmra.mrb[0].mxu0 %v533
      %v1862 = vpop.f32.mrb[0].mxu0
      %v1863 = vadd.f32 %v405, %v1862
      %v1864 = vpop.f32.mrb[0].mxu0
      %v1865 = vadd.f32 %v405, %v1864
      %v1866 = vpop.f32.mrb[0].mxu0
      %v1867 = vadd.f32 %v410, %v1866
      %v1868 = vpop.f32.mrb[0].mxu0
      %v1869 = vadd.f32 %v410, %v1868
      %1870 = vmatprep.mubr.bf16.mxu0 0
      %1871 = vmatmul.mubr.bf16.gmra.mrb[0].mxu0 %v536
      %v1872 = vpop.f32.mrb[0].mxu0
      %v1873 = vadd.f32 %v415, %v1872
      %v1874 = vpop.f32.mrb[0].mxu0
      %v1875 = vadd.f32 %v415, %v1874
      %v1876 = vpop.f32.mrb[0].mxu0
      %v1877 = vadd.f32 %v420, %v1876
      %v1878 = vpop.f32.mrb[0].mxu0
      %v1879 = vadd.f32 %v420, %v1878
      %1880 = vmatprep.mubr.bf16.mxu0 0
      %1881 = vmatmul.mubr.bf16.gmra.mrb[0].mxu0 %v539
      %v1882 = vpop.f32.mrb[0].mxu0
      %v1883 = vadd.f32 %v425, %v1882
      %v1884 = vpop.f32.mrb[0].mxu0
      %v1885 = vadd.f32 %v425, %v1884
      %v1886 = vpop.f32.mrb[0].mxu0
      %v1887 = vadd.f32 %v430, %v1886
      %v1888 = vpop.f32.mrb[0].mxu0
      %v1889 = vadd.f32 %v430, %v1888
      %1890 = vmatprep.mubr.bf16.mxu0 0
      %1891 = vmatmul.mubr.bf16.gmra.mrb[0].mxu0 %v542
      %v1892 = vpop.f32.mrb[0].mxu0
      %v1893 = vadd.f32 %v435, %v1892
      %v1894 = vpop.f32.mrb[0].mxu0
      %v1895 = vadd.f32 %v435, %v1894
      %v1896 = vpop.f32.mrb[0].mxu0
      %v1897 = vadd.f32 %v440, %v1896
      %v1898 = vpop.f32.mrb[0].mxu0
      %v1899 = vadd.f32 %v440, %v1898
      %1900 = vmatprep.mubr.bf16.mxu0 0
      %1901 = vmatmul.mubr.bf16.gmra.mrb[0].mxu0 %v545
      %v1902 = vpop.f32.mrb[0].mxu0
      %v1903 = vadd.f32 %v445, %v1902
      %v1904 = vpop.f32.mrb[0].mxu0
      %v1905 = vadd.f32 %v445, %v1904
      %v1906 = vpop.f32.mrb[0].mxu0
      %v1907 = vadd.f32 %v450, %v1906
      %v1908 = vpop.f32.mrb[0].mxu0
      %v1909 = vadd.f32 %v450, %v1908
      %1910 = vmatprep.mubr.bf16.mxu0 0
      %1911 = vmatmul.mubr.bf16.gmra.mrb[0].mxu0 %v548
      %v1912 = vpop.f32.mrb[0].mxu0
      %v1913 = vadd.f32 %v455, %v1912
      %v1914 = vpop.f32.mrb[0].mxu0
      %v1915 = vadd.f32 %v455, %v1914
      %v1916 = vpop.f32.mrb[0].mxu0
      %v1917 = vadd.f32 %v460, %v1916
      %v1918 = vpop.f32.mrb[0].mxu0
      %v1919 = vadd.f32 %v460, %v1918
      %1920 = vmatprep.mubr.bf16.mxu0 0
      %1921 = vmatmul.mubr.bf16.gmra.mrb[0].mxu0 %v551
      %v1922 = vpop.f32.mrb[0].mxu0
      %v1923 = vadd.f32 %v465, %v1922
      %v1924 = vpop.f32.mrb[0].mxu0
      %v1925 = vadd.f32 %v465, %v1924
      %v1926 = vpop.f32.mrb[0].mxu0
      %v1927 = vadd.f32 %v470, %v1926
      %v1928 = vpop.f32.mrb[0].mxu0
      %v1929 = vadd.f32 %v470, %v1928
      %1930 = vmatprep.mubr.bf16.mxu0 0
      %1931 = vmatmul.mubr.bf16.gmra.mrb[0].mxu0 %v554
      %v1932 = vpop.f32.mrb[0].mxu0
      %v1933 = vadd.f32 %v475, %v1932
      %v1934 = vpop.f32.mrb[0].mxu0
      %v1935 = vadd.f32 %v475, %v1934
      %v1936 = vpop.f32.mrb[0].mxu0
      %v1937 = vadd.f32 %v480, %v1936
      %v1938 = vpop.f32.mrb[0].mxu0
      %v1939 = vadd.f32 %v480, %v1938
      %1940 = vdwg.mxu0
      %v1941 = vmax.f32 %v1863, 0.0
      %v1942 = vmax.f32 %v1865, 0.0
      %v1943 = vmax.f32 %v1867, 0.0
      %v1944 = vmax.f32 %v1869, 0.0
      %v1945 = vmax.f32 %v1873, 0.0
      %v1946 = vmax.f32 %v1875, 0.0
      %v1947 = vmax.f32 %v1877, 0.0
      %v1948 = vmax.f32 %v1879, 0.0
      %v1949 = vmax.f32 %v1883, 0.0
      %v1950 = vmax.f32 %v1885, 0.0
      %v1951 = vmax.f32 %v1887, 0.0
      %v1952 = vmax.f32 %v1889, 0.0
      %v1953 = vmax.f32 %v1893, 0.0
      %v1954 = vmax.f32 %v1895, 0.0
      %v1955 = vmax.f32 %v1897, 0.0
      %v1956 = vmax.f32 %v1899, 0.0
      %v1957 = vmax.f32 %v1903, 0.0
      %v1958 = vmax.f32 %v1905, 0.0
      %v1959 = vmax.f32 %v1907, 0.0
      %v1960 = vmax.f32 %v1909, 0.0
      %v1961 = vmax.f32 %v1913, 0.0
      %v1962 = vmax.f32 %v1915, 0.0
      %v1963 = vmax.f32 %v1917, 0.0
      %v1964 = vmax.f32 %v1919, 0.0
      %v1965 = vmax.f32 %v1923, 0.0
      %v1966 = vmax.f32 %v1925, 0.0
      %v1967 = vmax.f32 %v1927, 0.0
      %v1968 = vmax.f32 %v1929, 0.0
      %v1969 = vmax.f32 %v1933, 0.0
      %v1970 = vmax.f32 %v1935, 0.0
      %v1971 = vmax.f32 %v1937, 0.0
      %v1972 = vmax.f32 %v1939, 0.0
      %v1973 = vadd.f32 %v1941, %v1942
      %1974 = vadd.xlane.f32.xlu0 %v1973
      %v1975 = vpop.xlane.xlu0 %1974
      %v1976 = vadd.f32 %v1943, %v1944
      %1977 = vadd.xlane.f32.xlu0 %v1976
      %v1978 = vpop.xlane.xlu0 %1977
      %v1979 = vadd.f32 %v1945, %v1946
      %1980 = vadd.xlane.f32.xlu0 %v1979
      %v1981 = vpop.xlane.xlu0 %1980
      %v1982 = vadd.f32 %v1947, %v1948
      %1983 = vadd.xlane.f32.xlu0 %v1982
      %v1984 = vpop.xlane.xlu0 %1983
      %v1985 = vadd.f32 %v1949, %v1950
      %1986 = vadd.xlane.f32.xlu0 %v1985
      %v1987 = vpop.xlane.xlu0 %1986
      %v1988 = vadd.f32 %v1951, %v1952
      %1989 = vadd.xlane.f32.xlu0 %v1988
      %v1990 = vpop.xlane.xlu0 %1989
      %v1991 = vadd.f32 %v1953, %v1954
      %1992 = vadd.xlane.f32.xlu0 %v1991
      %v1993 = vpop.xlane.xlu0 %1992
      %v1994 = vadd.f32 %v1955, %v1956
      %1995 = vadd.xlane.f32.xlu0 %v1994
      %v1996 = vpop.xlane.xlu0 %1995
      %v1997 = vadd.f32 %v1957, %v1958
      %1998 = vadd.xlane.f32.xlu0 %v1997
      %v1999 = vpop.xlane.xlu0 %1998
      %v2000 = vadd.f32 %v1959, %v1960
      %2001 = vadd.xlane.f32.xlu0 %v2000
      %v2002 = vpop.xlane.xlu0 %2001
      %v2003 = vadd.f32 %v1961, %v1962
      %2004 = vadd.xlane.f32.xlu0 %v2003
      %v2005 = vpop.xlane.xlu0 %2004
      %v2006 = vadd.f32 %v1963, %v1964
      %2007 = vadd.xlane.f32.xlu0 %v2006
      %v2008 = vpop.xlane.xlu0 %2007
      %v2009 = vadd.f32 %v1965, %v1966
      %2010 = vadd.xlane.f32.xlu0 %v2009
      %v2011 = vpop.xlane.xlu0 %2010
      %v2012 = vadd.f32 %v1967, %v1968
      %2013 = vadd.xlane.f32.xlu0 %v2012
      %v2014 = vpop.xlane.xlu0 %2013
      %v2015 = vadd.f32 %v1969, %v1970
      %2016 = vadd.xlane.f32.xlu0 %v2015
      %v2017 = vpop.xlane.xlu0 %2016
      %v2018 = vadd.f32 %v1971, %v1972
      %2019 = vadd.xlane.f32.xlu0 %v2018
      %v2020 = vpop.xlane.xlu0 %2019
      %v2021 = vadd.f32 %v1793, %v1975
      %v2022 = vadd.f32 %v1794, %v1978
      %v2023 = vadd.f32 %v1795, %v1981
      %v2024 = vadd.f32 %v1796, %v1984
      %v2025 = vadd.f32 %v1797, %v1987
      %v2026 = vadd.f32 %v1798, %v1990
      %v2027 = vadd.f32 %v1799, %v1993
      %v2028 = vadd.f32 %v1800, %v1996
      %v2029 = vadd.f32 %v1801, %v1999
      %v2030 = vadd.f32 %v1802, %v2002
      %v2031 = vadd.f32 %v1803, %v2005
      %v2032 = vadd.f32 %v1804, %v2008
      %v2033 = vadd.f32 %v1805, %v2011
      %v2034 = vadd.f32 %v1806, %v2014
      %v2035 = vadd.f32 %v1807, %v2017
      %v2036 = vadd.f32 %v1808, %v2020
      %s2037 = sadd.s32 4, 8
      %s2038 = smul.addr %s2037, 2
      %s2039 = scalar_lea.vmem %s335, %s2038
      %v2040 = vld [vmem:[%s2039] sm:$0xf]
      %v2043 = vunpack.c.l.s4 1983009808
      %v2044 = vunpack.c.0.s8 %v2043
      %v2045 = vlaneseq
      %v2046 = vshrl.u32 %v2045, 7
      %v2047 = vsub.s32 %v2044, %v2046
      %v2048 = vrot.slane %v2040, %v2047
      %v2049 = vcombine.high %v2048, %v2048
      %v2051 = vsel %vm556, %v2048, 0
      %v2054 = vsel %vm556, %v2049, 0
      %2056 = vmatprep.subr.bf16.mxu0 %v2054
      %2057 = vmatpush1.bf16.msra.mxu0 %v2051
      %2058 = vmatprep.subr.bf16.mxu0 0
      %2059 = vmatpush1.bf16.msra.mxu0 0
      %2060 = vmatprep.subr.bf16.mxu0 0
      %2061 = vmatpush1.bf16.msra.mxu0 0
      %2062 = vmatprep.subr.bf16.mxu0 0
      %2063 = vmatpush1.bf16.msra.mxu0 0
      %2064 = vmatprep.subr.bf16.mxu0 0
      %2065 = vmatpush1.bf16.msra.mxu0 0
      %2066 = vmatprep.subr.bf16.mxu0 0
      %2067 = vmatpush1.bf16.msra.mxu0 0
      %2068 = vmatprep.subr.bf16.mxu0 0
      %2069 = vmatpush1.bf16.msra.mxu0 0
      %2070 = vmatprep.subr.bf16.mxu0 0
      %2071 = vmatpush1.bf16.msra.mxu0 0
      %2072 = vmatprep.subr.bf16.mxu0 0
      %2073 = vmatpush1.bf16.msra.mxu0 0
      %2074 = vmatprep.subr.bf16.mxu0 0
      %2075 = vmatpush1.bf16.msra.mxu0 0
      %2076 = vmatprep.subr.bf16.mxu0 0
      %2077 = vmatpush1.bf16.msra.mxu0 0
      %2078 = vmatprep.subr.bf16.mxu0 0
      %2079 = vmatpush1.bf16.msra.mxu0 0
      %2080 = vmatprep.subr.bf16.mxu0 0
      %2081 = vmatpush1.bf16.msra.mxu0 0
      %2082 = vmatprep.subr.bf16.mxu0 0
      %2083 = vmatpush1.bf16.msra.mxu0 0
      %2084 = vmatprep.subr.bf16.mxu0 0
      %2085 = vmatpush1.bf16.msra.mxu0 0
      %2086 = vmatprep.subr.bf16.mxu0 0
      %2087 = vmatpush1.bf16.msra.mxu0 0
      %2088 = vmatprep.mubr.bf16.mxu0 0
      %2089 = vmatmul.mubr.bf16.gmra.mrb[0].mxu0 %v533
      %v2090 = vpop.f32.mrb[0].mxu0
      %v2091 = vadd.f32 %v405, %v2090
      %v2092 = vpop.f32.mrb[0].mxu0
      %v2093 = vadd.f32 %v405, %v2092
      %v2094 = vpop.f32.mrb[0].mxu0
      %v2095 = vadd.f32 %v410, %v2094
      %v2096 = vpop.f32.mrb[0].mxu0
      %v2097 = vadd.f32 %v410, %v2096
      %2098 = vmatprep.mubr.bf16.mxu0 0
      %2099 = vmatmul.mubr.bf16.gmra.mrb[0].mxu0 %v536
      %v2100 = vpop.f32.mrb[0].mxu0
      %v2101 = vadd.f32 %v415, %v2100
      %v2102 = vpop.f32.mrb[0].mxu0
      %v2103 = vadd.f32 %v415, %v2102
      %v2104 = vpop.f32.mrb[0].mxu0
      %v2105 = vadd.f32 %v420, %v2104
      %v2106 = vpop.f32.mrb[0].mxu0
      %v2107 = vadd.f32 %v420, %v2106
      %2108 = vmatprep.mubr.bf16.mxu0 0
      %2109 = vmatmul.mubr.bf16.gmra.mrb[0].mxu0 %v539
      %v2110 = vpop.f32.mrb[0].mxu0
      %v2111 = vadd.f32 %v425, %v2110
      %v2112 = vpop.f32.mrb[0].mxu0
      %v2113 = vadd.f32 %v425, %v2112
      %v2114 = vpop.f32.mrb[0].mxu0
      %v2115 = vadd.f32 %v430, %v2114
      %v2116 = vpop.f32.mrb[0].mxu0
      %v2117 = vadd.f32 %v430, %v2116
      %2118 = vmatprep.mubr.bf16.mxu0 0
      %2119 = vmatmul.mubr.bf16.gmra.mrb[0].mxu0 %v542
      %v2120 = vpop.f32.mrb[0].mxu0
      %v2121 = vadd.f32 %v435, %v2120
      %v2122 = vpop.f32.mrb[0].mxu0
      %v2123 = vadd.f32 %v435, %v2122
      %v2124 = vpop.f32.mrb[0].mxu0
      %v2125 = vadd.f32 %v440, %v2124
      %v2126 = vpop.f32.mrb[0].mxu0
      %v2127 = vadd.f32 %v440, %v2126
      %2128 = vmatprep.mubr.bf16.mxu0 0
      %2129 = vmatmul.mubr.bf16.gmra.mrb[0].mxu0 %v545
      %v2130 = vpop.f32.mrb[0].mxu0
      %v2131 = vadd.f32 %v445, %v2130
      %v2132 = vpop.f32.mrb[0].mxu0
      %v2133 = vadd.f32 %v445, %v2132
      %v2134 = vpop.f32.mrb[0].mxu0
      %v2135 = vadd.f32 %v450, %v2134
      %v2136 = vpop.f32.mrb[0].mxu0
      %v2137 = vadd.f32 %v450, %v2136
      %2138 = vmatprep.mubr.bf16.mxu0 0
      %2139 = vmatmul.mubr.bf16.gmra.mrb[0].mxu0 %v548
      %v2140 = vpop.f32.mrb[0].mxu0
      %v2141 = vadd.f32 %v455, %v2140
      %v2142 = vpop.f32.mrb[0].mxu0
      %v2143 = vadd.f32 %v455, %v2142
      %v2144 = vpop.f32.mrb[0].mxu0
      %v2145 = vadd.f32 %v460, %v2144
      %v2146 = vpop.f32.mrb[0].mxu0
      %v2147 = vadd.f32 %v460, %v2146
      %2148 = vmatprep.mubr.bf16.mxu0 0
      %2149 = vmatmul.mubr.bf16.gmra.mrb[0].mxu0 %v551
      %v2150 = vpop.f32.mrb[0].mxu0
      %v2151 = vadd.f32 %v465, %v2150
      %v2152 = vpop.f32.mrb[0].mxu0
      %v2153 = vadd.f32 %v465, %v2152
      %v2154 = vpop.f32.mrb[0].mxu0
      %v2155 = vadd.f32 %v470, %v2154
      %v2156 = vpop.f32.mrb[0].mxu0
      %v2157 = vadd.f32 %v470, %v2156
      %2158 = vmatprep.mubr.bf16.mxu0 0
      %2159 = vmatmul.mubr.bf16.gmra.mrb[0].mxu0 %v554
      %v2160 = vpop.f32.mrb[0].mxu0
      %v2161 = vadd.f32 %v475, %v2160
      %v2162 = vpop.f32.mrb[0].mxu0
      %v2163 = vadd.f32 %v475, %v2162
      %v2164 = vpop.f32.mrb[0].mxu0
      %v2165 = vadd.f32 %v480, %v2164
      %v2166 = vpop.f32.mrb[0].mxu0
      %v2167 = vadd.f32 %v480, %v2166
      %2168 = vdwg.mxu0
      %v2169 = vmax.f32 %v2091, 0.0
      %v2170 = vmax.f32 %v2093, 0.0
      %v2171 = vmax.f32 %v2095, 0.0
      %v2172 = vmax.f32 %v2097, 0.0
      %v2173 = vmax.f32 %v2101, 0.0
      %v2174 = vmax.f32 %v2103, 0.0
      %v2175 = vmax.f32 %v2105, 0.0
      %v2176 = vmax.f32 %v2107, 0.0
      %v2177 = vmax.f32 %v2111, 0.0
      %v2178 = vmax.f32 %v2113, 0.0
      %v2179 = vmax.f32 %v2115, 0.0
      %v2180 = vmax.f32 %v2117, 0.0
      %v2181 = vmax.f32 %v2121, 0.0
      %v2182 = vmax.f32 %v2123, 0.0
      %v2183 = vmax.f32 %v2125, 0.0
      %v2184 = vmax.f32 %v2127, 0.0
      %v2185 = vmax.f32 %v2131, 0.0
      %v2186 = vmax.f32 %v2133, 0.0
      %v2187 = vmax.f32 %v2135, 0.0
      %v2188 = vmax.f32 %v2137, 0.0
      %v2189 = vmax.f32 %v2141, 0.0
      %v2190 = vmax.f32 %v2143, 0.0
      %v2191 = vmax.f32 %v2145, 0.0
      %v2192 = vmax.f32 %v2147, 0.0
      %v2193 = vmax.f32 %v2151, 0.0
      %v2194 = vmax.f32 %v2153, 0.0
      %v2195 = vmax.f32 %v2155, 0.0
      %v2196 = vmax.f32 %v2157, 0.0
      %v2197 = vmax.f32 %v2161, 0.0
      %v2198 = vmax.f32 %v2163, 0.0
      %v2199 = vmax.f32 %v2165, 0.0
      %v2200 = vmax.f32 %v2167, 0.0
      %v2201 = vadd.f32 %v2169, %v2170
      %2202 = vadd.xlane.f32.xlu0 %v2201
      %v2203 = vpop.xlane.xlu0 %2202
      %v2204 = vadd.f32 %v2171, %v2172
      %2205 = vadd.xlane.f32.xlu0 %v2204
      %v2206 = vpop.xlane.xlu0 %2205
      %v2207 = vadd.f32 %v2173, %v2174
      %2208 = vadd.xlane.f32.xlu0 %v2207
      %v2209 = vpop.xlane.xlu0 %2208
      %v2210 = vadd.f32 %v2175, %v2176
      %2211 = vadd.xlane.f32.xlu0 %v2210
      %v2212 = vpop.xlane.xlu0 %2211
      %v2213 = vadd.f32 %v2177, %v2178
      %2214 = vadd.xlane.f32.xlu0 %v2213
      %v2215 = vpop.xlane.xlu0 %2214
      %v2216 = vadd.f32 %v2179, %v2180
      %2217 = vadd.xlane.f32.xlu0 %v2216
      %v2218 = vpop.xlane.xlu0 %2217
      %v2219 = vadd.f32 %v2181, %v2182
      %2220 = vadd.xlane.f32.xlu0 %v2219
      %v2221 = vpop.xlane.xlu0 %2220
      %v2222 = vadd.f32 %v2183, %v2184
      %2223 = vadd.xlane.f32.xlu0 %v2222
      %v2224 = vpop.xlane.xlu0 %2223
      %v2225 = vadd.f32 %v2185, %v2186
      %2226 = vadd.xlane.f32.xlu0 %v2225
      %v2227 = vpop.xlane.xlu0 %2226
      %v2228 = vadd.f32 %v2187, %v2188
      %2229 = vadd.xlane.f32.xlu0 %v2228
      %v2230 = vpop.xlane.xlu0 %2229
      %v2231 = vadd.f32 %v2189, %v2190
      %2232 = vadd.xlane.f32.xlu0 %v2231
      %v2233 = vpop.xlane.xlu0 %2232
      %v2234 = vadd.f32 %v2191, %v2192
      %2235 = vadd.xlane.f32.xlu0 %v2234
      %v2236 = vpop.xlane.xlu0 %2235
      %v2237 = vadd.f32 %v2193, %v2194
      %2238 = vadd.xlane.f32.xlu0 %v2237
      %v2239 = vpop.xlane.xlu0 %2238
      %v2240 = vadd.f32 %v2195, %v2196
      %2241 = vadd.xlane.f32.xlu0 %v2240
      %v2242 = vpop.xlane.xlu0 %2241
      %v2243 = vadd.f32 %v2197, %v2198
      %2244 = vadd.xlane.f32.xlu0 %v2243
      %v2245 = vpop.xlane.xlu0 %2244
      %v2246 = vadd.f32 %v2199, %v2200
      %2247 = vadd.xlane.f32.xlu0 %v2246
      %v2248 = vpop.xlane.xlu0 %2247
      %v2249 = vadd.f32 %v2021, %v2203
      %v2250 = vadd.f32 %v2022, %v2206
      %v2251 = vadd.f32 %v2023, %v2209
      %v2252 = vadd.f32 %v2024, %v2212
      %v2253 = vadd.f32 %v2025, %v2215
      %v2254 = vadd.f32 %v2026, %v2218
      %v2255 = vadd.f32 %v2027, %v2221
      %v2256 = vadd.f32 %v2028, %v2224
      %v2257 = vadd.f32 %v2029, %v2227
      %v2258 = vadd.f32 %v2030, %v2230
      %v2259 = vadd.f32 %v2031, %v2233
      %v2260 = vadd.f32 %v2032, %v2236
      %v2261 = vadd.f32 %v2033, %v2239
      %v2262 = vadd.f32 %v2034, %v2242
      %v2263 = vadd.f32 %v2035, %v2245
      %v2264 = vadd.f32 %v2036, %v2248
      %s2265 = sadd.s32 6, 8
      %s2266 = smul.addr %s2265, 2
      %s2267 = scalar_lea.vmem %s335, %s2266
      %v2268 = vld [vmem:[%s2267] sm:$0xf]
      %v2271 = vunpack.c.l.s4 1983009808
      %v2272 = vunpack.c.0.s8 %v2271
      %v2273 = vlaneseq
      %v2274 = vshrl.u32 %v2273, 7
      %v2275 = vsub.s32 %v2272, %v2274
      %v2276 = vrot.slane %v2268, %v2275
      %v2277 = vcombine.high %v2276, %v2276
      %v2279 = vsel %vm556, %v2276, 0
      %v2282 = vsel %vm556, %v2277, 0
      %2284 = vmatprep.subr.bf16.mxu0 %v2282
      %2285 = vmatpush1.bf16.msra.mxu0 %v2279
      %2286 = vmatprep.subr.bf16.mxu0 0
      %2287 = vmatpush1.bf16.msra.mxu0 0
      %2288 = vmatprep.subr.bf16.mxu0 0
      %2289 = vmatpush1.bf16.msra.mxu0 0
      %2290 = vmatprep.subr.bf16.mxu0 0
      %2291 = vmatpush1.bf16.msra.mxu0 0
      %2292 = vmatprep.subr.bf16.mxu0 0
      %2293 = vmatpush1.bf16.msra.mxu0 0
      %2294 = vmatprep.subr.bf16.mxu0 0
      %2295 = vmatpush1.bf16.msra.mxu0 0
      %2296 = vmatprep.subr.bf16.mxu0 0
      %2297 = vmatpush1.bf16.msra.mxu0 0
      %2298 = vmatprep.subr.bf16.mxu0 0
      %2299 = vmatpush1.bf16.msra.mxu0 0
      %2300 = vmatprep.subr.bf16.mxu0 0
      %2301 = vmatpush1.bf16.msra.mxu0 0
      %2302 = vmatprep.subr.bf16.mxu0 0
      %2303 = vmatpush1.bf16.msra.mxu0 0
      %2304 = vmatprep.subr.bf16.mxu0 0
      %2305 = vmatpush1.bf16.msra.mxu0 0
      %2306 = vmatprep.subr.bf16.mxu0 0
      %2307 = vmatpush1.bf16.msra.mxu0 0
      %2308 = vmatprep.subr.bf16.mxu0 0
      %2309 = vmatpush1.bf16.msra.mxu0 0
      %2310 = vmatprep.subr.bf16.mxu0 0
      %2311 = vmatpush1.bf16.msra.mxu0 0
      %2312 = vmatprep.subr.bf16.mxu0 0
      %2313 = vmatpush1.bf16.msra.mxu0 0
      %2314 = vmatprep.subr.bf16.mxu0 0
      %2315 = vmatpush1.bf16.msra.mxu0 0
      %2316 = vmatprep.mubr.bf16.mxu0 0
      %2317 = vmatmul.mubr.bf16.gmra.mrb[0].mxu0 %v533
      %v2318 = vpop.f32.mrb[0].mxu0
      %v2319 = vadd.f32 %v405, %v2318
      %v2320 = vpop.f32.mrb[0].mxu0
      %v2321 = vadd.f32 %v405, %v2320
      %v2322 = vpop.f32.mrb[0].mxu0
      %v2323 = vadd.f32 %v410, %v2322
      %v2324 = vpop.f32.mrb[0].mxu0
      %v2325 = vadd.f32 %v410, %v2324
      %2326 = vmatprep.mubr.bf16.mxu0 0
      %2327 = vmatmul.mubr.bf16.gmra.mrb[0].mxu0 %v536
      %v2328 = vpop.f32.mrb[0].mxu0
      %v2329 = vadd.f32 %v415, %v2328
      %v2330 = vpop.f32.mrb[0].mxu0
      %v2331 = vadd.f32 %v415, %v2330
      %v2332 = vpop.f32.mrb[0].mxu0
      %v2333 = vadd.f32 %v420, %v2332
      %v2334 = vpop.f32.mrb[0].mxu0
      %v2335 = vadd.f32 %v420, %v2334
      %2336 = vmatprep.mubr.bf16.mxu0 0
      %2337 = vmatmul.mubr.bf16.gmra.mrb[0].mxu0 %v539
      %v2338 = vpop.f32.mrb[0].mxu0
      %v2339 = vadd.f32 %v425, %v2338
      %v2340 = vpop.f32.mrb[0].mxu0
      %v2341 = vadd.f32 %v425, %v2340
      %v2342 = vpop.f32.mrb[0].mxu0
      %v2343 = vadd.f32 %v430, %v2342
      %v2344 = vpop.f32.mrb[0].mxu0
      %v2345 = vadd.f32 %v430, %v2344
      %2346 = vmatprep.mubr.bf16.mxu0 0
      %2347 = vmatmul.mubr.bf16.gmra.mrb[0].mxu0 %v542
      %v2348 = vpop.f32.mrb[0].mxu0
      %v2349 = vadd.f32 %v435, %v2348
      %v2350 = vpop.f32.mrb[0].mxu0
      %v2351 = vadd.f32 %v435, %v2350
      %v2352 = vpop.f32.mrb[0].mxu0
      %v2353 = vadd.f32 %v440, %v2352
      %v2354 = vpop.f32.mrb[0].mxu0
      %v2355 = vadd.f32 %v440, %v2354
      %2356 = vmatprep.mubr.bf16.mxu0 0
      %2357 = vmatmul.mubr.bf16.gmra.mrb[0].mxu0 %v545
      %v2358 = vpop.f32.mrb[0].mxu0
      %v2359 = vadd.f32 %v445, %v2358
      %v2360 = vpop.f32.mrb[0].mxu0
      %v2361 = vadd.f32 %v445, %v2360
      %v2362 = vpop.f32.mrb[0].mxu0
      %v2363 = vadd.f32 %v450, %v2362
      %v2364 = vpop.f32.mrb[0].mxu0
      %v2365 = vadd.f32 %v450, %v2364
      %2366 = vmatprep.mubr.bf16.mxu0 0
      %2367 = vmatmul.mubr.bf16.gmra.mrb[0].mxu0 %v548
      %v2368 = vpop.f32.mrb[0].mxu0
      %v2369 = vadd.f32 %v455, %v2368
      %v2370 = vpop.f32.mrb[0].mxu0
      %v2371 = vadd.f32 %v455, %v2370
      %v2372 = vpop.f32.mrb[0].mxu0
      %v2373 = vadd.f32 %v460, %v2372
      %v2374 = vpop.f32.mrb[0].mxu0
      %v2375 = vadd.f32 %v460, %v2374
      %2376 = vmatprep.mubr.bf16.mxu0 0
      %2377 = vmatmul.mubr.bf16.gmra.mrb[0].mxu0 %v551
      %v2378 = vpop.f32.mrb[0].mxu0
      %v2379 = vadd.f32 %v465, %v2378
      %v2380 = vpop.f32.mrb[0].mxu0
      %v2381 = vadd.f32 %v465, %v2380
      %v2382 = vpop.f32.mrb[0].mxu0
      %v2383 = vadd.f32 %v470, %v2382
      %v2384 = vpop.f32.mrb[0].mxu0
      %v2385 = vadd.f32 %v470, %v2384
      %2386 = vmatprep.mubr.bf16.mxu0 0
      %2387 = vmatmul.mubr.bf16.gmra.mrb[0].mxu0 %v554
      %v2388 = vpop.f32.mrb[0].mxu0
      %v2389 = vadd.f32 %v475, %v2388
      %v2390 = vpop.f32.mrb[0].mxu0
      %v2391 = vadd.f32 %v475, %v2390
      %v2392 = vpop.f32.mrb[0].mxu0
      %v2393 = vadd.f32 %v480, %v2392
      %v2394 = vpop.f32.mrb[0].mxu0
      %v2395 = vadd.f32 %v480, %v2394
      %2396 = vdwg.mxu0
      %v2397 = vmax.f32 %v2319, 0.0
      %v2398 = vmax.f32 %v2321, 0.0
      %v2399 = vmax.f32 %v2323, 0.0
      %v2400 = vmax.f32 %v2325, 0.0
      %v2401 = vmax.f32 %v2329, 0.0
      %v2402 = vmax.f32 %v2331, 0.0
      %v2403 = vmax.f32 %v2333, 0.0
      %v2404 = vmax.f32 %v2335, 0.0
      %v2405 = vmax.f32 %v2339, 0.0
      %v2406 = vmax.f32 %v2341, 0.0
      %v2407 = vmax.f32 %v2343, 0.0
      %v2408 = vmax.f32 %v2345, 0.0
      %v2409 = vmax.f32 %v2349, 0.0
      %v2410 = vmax.f32 %v2351, 0.0
      %v2411 = vmax.f32 %v2353, 0.0
      %v2412 = vmax.f32 %v2355, 0.0
      %v2413 = vmax.f32 %v2359, 0.0
      %v2414 = vmax.f32 %v2361, 0.0
      %v2415 = vmax.f32 %v2363, 0.0
      %v2416 = vmax.f32 %v2365, 0.0
      %v2417 = vmax.f32 %v2369, 0.0
      %v2418 = vmax.f32 %v2371, 0.0
      %v2419 = vmax.f32 %v2373, 0.0
      %v2420 = vmax.f32 %v2375, 0.0
      %v2421 = vmax.f32 %v2379, 0.0
      %v2422 = vmax.f32 %v2381, 0.0
      %v2423 = vmax.f32 %v2383, 0.0
      %v2424 = vmax.f32 %v2385, 0.0
      %v2425 = vmax.f32 %v2389, 0.0
      %v2426 = vmax.f32 %v2391, 0.0
      %v2427 = vmax.f32 %v2393, 0.0
      %v2428 = vmax.f32 %v2395, 0.0
      %v2429 = vadd.f32 %v2397, %v2398
      %2430 = vadd.xlane.f32.xlu0 %v2429
      %v2431 = vpop.xlane.xlu0 %2430
      %v2432 = vadd.f32 %v2399, %v2400
      %2433 = vadd.xlane.f32.xlu0 %v2432
      %v2434 = vpop.xlane.xlu0 %2433
      %v2435 = vadd.f32 %v2401, %v2402
      %2436 = vadd.xlane.f32.xlu0 %v2435
      %v2437 = vpop.xlane.xlu0 %2436
      %v2438 = vadd.f32 %v2403, %v2404
      %2439 = vadd.xlane.f32.xlu0 %v2438
      %v2440 = vpop.xlane.xlu0 %2439
      %v2441 = vadd.f32 %v2405, %v2406
      %2442 = vadd.xlane.f32.xlu0 %v2441
      %v2443 = vpop.xlane.xlu0 %2442
      %v2444 = vadd.f32 %v2407, %v2408
      %2445 = vadd.xlane.f32.xlu0 %v2444
      %v2446 = vpop.xlane.xlu0 %2445
      %v2447 = vadd.f32 %v2409, %v2410
      %2448 = vadd.xlane.f32.xlu0 %v2447
      %v2449 = vpop.xlane.xlu0 %2448
      %v2450 = vadd.f32 %v2411, %v2412
      %2451 = vadd.xlane.f32.xlu0 %v2450
      %v2452 = vpop.xlane.xlu0 %2451
      %v2453 = vadd.f32 %v2413, %v2414
      %2454 = vadd.xlane.f32.xlu0 %v2453
      %v2455 = vpop.xlane.xlu0 %2454
      %v2456 = vadd.f32 %v2415, %v2416
      %2457 = vadd.xlane.f32.xlu0 %v2456
      %v2458 = vpop.xlane.xlu0 %2457
      %v2459 = vadd.f32 %v2417, %v2418
      %2460 = vadd.xlane.f32.xlu0 %v2459
      %v2461 = vpop.xlane.xlu0 %2460
      %v2462 = vadd.f32 %v2419, %v2420
      %2463 = vadd.xlane.f32.xlu0 %v2462
      %v2464 = vpop.xlane.xlu0 %2463
      %v2465 = vadd.f32 %v2421, %v2422
      %2466 = vadd.xlane.f32.xlu0 %v2465
      %v2467 = vpop.xlane.xlu0 %2466
      %v2468 = vadd.f32 %v2423, %v2424
      %2469 = vadd.xlane.f32.xlu0 %v2468
      %v2470 = vpop.xlane.xlu0 %2469
      %v2471 = vadd.f32 %v2425, %v2426
      %2472 = vadd.xlane.f32.xlu0 %v2471
      %v2473 = vpop.xlane.xlu0 %2472
      %v2474 = vadd.f32 %v2427, %v2428
      %2475 = vadd.xlane.f32.xlu0 %v2474
      %v2476 = vpop.xlane.xlu0 %2475
      %v2477 = vadd.f32 %v2249, %v2431
      %v2478 = vadd.f32 %v2250, %v2434
      %v2479 = vadd.f32 %v2251, %v2437
      %v2480 = vadd.f32 %v2252, %v2440
      %v2481 = vadd.f32 %v2253, %v2443
      %v2482 = vadd.f32 %v2254, %v2446
      %v2483 = vadd.f32 %v2255, %v2449
      %v2484 = vadd.f32 %v2256, %v2452
      %v2485 = vadd.f32 %v2257, %v2455
      %v2486 = vadd.f32 %v2258, %v2458
      %v2487 = vadd.f32 %v2259, %v2461
      %v2488 = vadd.f32 %v2260, %v2464
      %v2489 = vadd.f32 %v2261, %v2467
      %v2490 = vadd.f32 %v2262, %v2470
      %v2491 = vadd.f32 %v2263, %v2473
      %v2492 = vadd.f32 %v2264, %v2476
      %v2493 = vld [vmem:[%s358 + $0x1] sm:$0x1]
      %v2510 = vlaneseq
      %v2511 = vshrl.u32 %v2510, 7
      %v2512 = vsub.s32 %v1468, %v2511
      %v2513 = vrot.slane %v2477, %v2512
      %v2514 = vlaneseq
      %v2515 = vshrl.u32 %v2514, 7
      %v2516 = vsub.s32 %v1473, %v2515
      %v2517 = vrot.slane %v2478, %v2516
      %v2518 = vsel %vm1478, %v2517, %v2513
      %v2519 = vlaneseq
      %v2520 = vshrl.u32 %v2519, 7
      %v2521 = vsub.s32 %v1480, %v2520
      %v2522 = vrot.slane %v2479, %v2521
      %v2523 = vsel %vm1485, %v2522, %v2518
      %v2524 = vlaneseq
      %v2525 = vshrl.u32 %v2524, 7
      %v2526 = vsub.s32 %v1487, %v2525
      %v2527 = vrot.slane %v2480, %v2526
      %v2528 = vsel %vm1492, %v2527, %v2523
      %v2529 = vlaneseq
      %v2530 = vshrl.u32 %v2529, 7
      %v2531 = vsub.s32 %v1494, %v2530
      %v2532 = vrot.slane %v2481, %v2531
      %v2533 = vsel %vm1499, %v2532, %v2528
      %v2534 = vlaneseq
      %v2535 = vshrl.u32 %v2534, 7
      %v2536 = vsub.s32 %v1501, %v2535
      %v2537 = vrot.slane %v2482, %v2536
      %v2538 = vsel %vm1506, %v2537, %v2533
      %v2539 = vlaneseq
      %v2540 = vshrl.u32 %v2539, 7
      %v2541 = vsub.s32 %v1508, %v2540
      %v2542 = vrot.slane %v2483, %v2541
      %v2543 = vsel %vm1513, %v2542, %v2538
      %v2544 = vlaneseq
      %v2545 = vshrl.u32 %v2544, 7
      %v2546 = vsub.s32 %v1515, %v2545
      %v2547 = vrot.slane %v2484, %v2546
      %v2548 = vsel %vm1520, %v2547, %v2543
      %v2549 = vlaneseq
      %v2550 = vshrl.u32 %v2549, 7
      %v2551 = vsub.s32 %v1522, %v2550
      %v2552 = vrot.slane %v2485, %v2551
      %v2553 = vsel %vm1527, %v2552, %v2548
      %v2554 = vlaneseq
      %v2555 = vshrl.u32 %v2554, 7
      %v2556 = vsub.s32 %v1529, %v2555
      %v2557 = vrot.slane %v2486, %v2556
      %v2558 = vsel %vm1534, %v2557, %v2553
      %v2559 = vlaneseq
      %v2560 = vshrl.u32 %v2559, 7
      %v2561 = vsub.s32 %v1536, %v2560
      %v2562 = vrot.slane %v2487, %v2561
      %v2563 = vsel %vm1541, %v2562, %v2558
      %v2564 = vlaneseq
      %v2565 = vshrl.u32 %v2564, 7
      %v2566 = vsub.s32 %v1543, %v2565
      %v2567 = vrot.slane %v2488, %v2566
      %v2568 = vsel %vm1548, %v2567, %v2563
      %v2569 = vlaneseq
      %v2570 = vshrl.u32 %v2569, 7
      %v2571 = vsub.s32 %v1550, %v2570
      %v2572 = vrot.slane %v2489, %v2571
      %v2573 = vsel %vm1555, %v2572, %v2568
      %v2574 = vlaneseq
      %v2575 = vshrl.u32 %v2574, 7
      %v2576 = vsub.s32 %v1557, %v2575
      %v2577 = vrot.slane %v2490, %v2576
      %v2578 = vsel %vm1562, %v2577, %v2573
      %v2579 = vlaneseq
      %v2580 = vshrl.u32 %v2579, 7
      %v2581 = vsub.s32 %v1564, %v2580
      %v2582 = vrot.slane %v2491, %v2581
      %v2583 = vsel %vm1569, %v2582, %v2578
      %v2584 = vlaneseq
      %v2585 = vshrl.u32 %v2584, 7
      %v2586 = vsub.s32 %v1571, %v2585
      %v2587 = vrot.slane %v2492, %v2586
      %v2588 = vsel %vm1576, %v2587, %v2583
      %v2590 = vadd.f32 %v2493, %v2588
      %2591 = vst [vmem:[%s358 + $0x1] sm:$0x1] %v2590
      // Predicated region
      $region45: #{two_branch_forward.1} parent=39 // pred_check
        %p2592 = pneg %p364
      $region46: #{two_branch_forward.1} parent=39 // pred_check_branch
        %2594 = sbr.rel (%p2592) target = $region48
      $region47: #{two_branch_forward.1} parent=39 // pred_region
        %v2595 = vld [vmem:[%s358] sm:$0x3]
        %v2596 = vmul.f32 %v2595, 0.0009765625
        %2597 = vst [vmem:[%s358] sm:$0x3] %v2596
        %v2598 = vld [vmem:[%s351] sm:$0xff]
        %v2599 = vld [vmem:[%s351 + $0x8] sm:$0xff]
        %v2600 = vld [vmem:[%s351 + $0x10] sm:$0xff]
        %v2601 = vld [vmem:[%s351 + $0x18] sm:$0xff]
        %v2602 = vld [vmem:[%s351 + $0x20] sm:$0xff]
        %v2603 = vld [vmem:[%s351 + $0x28] sm:$0xff]
        %v2604 = vld [vmem:[%s351 + $0x30] sm:$0xff]
        %v2605 = vld [vmem:[%s351 + $0x38] sm:$0xff]
        %v2606 = vld [vmem:[%s351 + $0x40] sm:$0xff]
        %v2607 = vld [vmem:[%s351 + $0x48] sm:$0xff]
        %v2608 = vld [vmem:[%s351 + $0x50] sm:$0xff]
        %v2609 = vld [vmem:[%s351 + $0x58] sm:$0xff]
        %v2610 = vld [vmem:[%s351 + $0x60] sm:$0xff]
        %v2611 = vld [vmem:[%s351 + $0x68] sm:$0xff]
        %v2612 = vld [vmem:[%s351 + $0x70] sm:$0xff]
        %v2613 = vld [vmem:[%s351 + $0x78] sm:$0xff]
        %v2614 = vld [vmem:[%s354] sm:$0x1]
        %v2616 = vlaneseq
        %v2617 = vshrl.u32 %v2616, 7
        %v2618 = vsub.s32 0, %v2617
        %v2619 = vrot.slane %v2614, %v2618
        %2621 = vmatprep.subr.mxu0 0.0
        %2622 = vmatpush1.msra.mxu0 %v2598
        %2623 = vmatprep.subr.mxu0 0.0
        %2624 = vmatpush1.msra.mxu0 %v2599
        %2625 = vmatprep.subr.mxu0 0.0
        %2626 = vmatpush1.msra.mxu0 %v2600
        %2627 = vmatprep.subr.mxu0 0.0
        %2628 = vmatpush1.msra.mxu0 %v2601
        %2629 = vmatprep.subr.mxu0 0.0
        %2630 = vmatpush1.msra.mxu0 %v2602
        %2631 = vmatprep.subr.mxu0 0.0
        %2632 = vmatpush1.msra.mxu0 %v2603
        %2633 = vmatprep.subr.mxu0 0.0
        %2634 = vmatpush1.msra.mxu0 %v2604
        %2635 = vmatprep.subr.mxu0 0.0
        %2636 = vmatpush1.msra.mxu0 %v2605
        %2637 = vmatprep.subr.mxu0 0.0
        %2638 = vmatpush1.msra.mxu0 %v2606
        %2639 = vmatprep.subr.mxu0 0.0
        %2640 = vmatpush1.msra.mxu0 %v2607
        %2641 = vmatprep.subr.mxu0 0.0
        %2642 = vmatpush1.msra.mxu0 %v2608
        %2643 = vmatprep.subr.mxu0 0.0
        %2644 = vmatpush1.msra.mxu0 %v2609
        %2645 = vmatprep.subr.mxu0 0.0
        %2646 = vmatpush1.msra.mxu0 %v2610
        %2647 = vmatprep.subr.mxu0 0.0
        %2648 = vmatpush1.msra.mxu0 %v2611
        %2649 = vmatprep.subr.mxu0 0.0
        %2650 = vmatpush1.msra.mxu0 %v2612
        %2651 = vmatprep.subr.mxu0 0.0
        %2652 = vmatpush1.msra.mxu0 %v2613
        %2653 = vmatprep.subr.mxu0 0.0
        %2654 = vmatpush1.msra.mxu0 0.0
        %2655 = vmatprep.subr.mxu0 0.0
        %2656 = vmatpush1.msra.mxu0 0.0
        %2657 = vmatprep.subr.mxu0 0.0
        %2658 = vmatpush1.msra.mxu0 0.0
        %2659 = vmatprep.subr.mxu0 0.0
        %2660 = vmatpush1.msra.mxu0 0.0
        %2661 = vmatprep.subr.mxu0 0.0
        %2662 = vmatpush1.msra.mxu0 0.0
        %2663 = vmatprep.subr.mxu0 0.0
        %2664 = vmatpush1.msra.mxu0 0.0
        %2665 = vmatprep.subr.mxu0 0.0
        %2666 = vmatpush1.msra.mxu0 0.0
        %2667 = vmatprep.subr.mxu0 0.0
        %2668 = vmatpush1.msra.mxu0 0.0
        %2669 = vmatprep.subr.mxu0 0.0
        %2670 = vmatpush1.msra.mxu0 0.0
        %2671 = vmatprep.subr.mxu0 0.0
        %2672 = vmatpush1.msra.mxu0 0.0
        %2673 = vmatprep.subr.mxu0 0.0
        %2674 = vmatpush1.msra.mxu0 0.0
        %2675 = vmatprep.subr.mxu0 0.0
        %2676 = vmatpush1.msra.mxu0 0.0
        %2677 = vmatprep.subr.mxu0 0.0
        %2678 = vmatpush1.msra.mxu0 0.0
        %2679 = vmatprep.subr.mxu0 0.0
        %2680 = vmatpush1.msra.mxu0 0.0
        %2681 = vmatprep.subr.mxu0 0.0
        %2682 = vmatpush1.msra.mxu0 0.0
        %2683 = vmatprep.subr.mxu0 0.0
        %2684 = vmatpush1.msra.mxu0 0.0
        %2685 = vmatprep.mubr.f32.mxu0 0.0
        %2686 = vmatmul.mubr.f32.gmra.mrb[0].mxu0 %v2596
        %v2687 = vpop.f32.mrb[0].mxu0
        %v2688 = vadd.f32 %v2619, %v2687
        %v2689 = vpop.f32.mrb[0].mxu0
        %2690 = vdwg.mxu0
        %v2691 = vmax.f32 %v2688, 0.0
        %2692 = vst [vmem:[%s362] sm:$0x3] %v2691
      $region48: #{two_branch_forward.1} parent=39 // pred_fallthru
        _
      %p2693 = scmp.lt.s32.totalorder %s22, 1
      %s2694 = scalar_select %p2693, %s22, 1
      %s2695 = smul.addr %s2694, 2
      %s2696 = scalar_lea.vmem %s5, %s2695
      %p2697 = scmp.lt.s32.totalorder %s22, 1
      %s2698 = scalar_select %p2697, %s22, 1
      %s2699 = smul.addr %s2698, 2
      %s2700 = scalar_lea.vmem %s6, %s2699
      // Predicated region
      $region49: #{two_branch_forward.1} parent=39 // pred_check
        %p2701 = pneg %p180
      $region50: #{two_branch_forward.1} parent=39 // pred_check_branch
        %2703 = sbr.rel (%p2701) target = $region52
      $region51: #{two_branch_forward.1} parent=39 // pred_region
        _
      $region52: #{two_branch_forward.1} parent=39 // pred_fallthru
        _
      // Predicated region
      $region53: #{two_branch_forward.1} parent=39 // pred_check
        %p2704 = pneg %p206
      $region54: #{two_branch_forward.1} parent=39 // pred_check_branch
        %2706 = sbr.rel (%p2704) target = $region56
      $region55: #{two_branch_forward.1} parent=39 // pred_region
        _
      $region56: #{two_branch_forward.1} parent=39 // pred_fallthru
        _
    $region40: #{two_branch_forward.1} parent=5 // pred_fallthru
      _
    %p2707 = scmp.le.s32.totalorder 2, %s13
    // Predicated region
    $region57: #{two_branch_forward.1} parent=5 // pred_check
      %p2708 = pneg %p2707
    $region58: #{two_branch_forward.1} parent=5 // pred_check_branch
      %2710 = sbr.rel (%p2708) target = $region60
    $region59: #{two_branch_forward.1} parent=5 // pred_region
      %s2711 = ssub.s32 %s13, 2
      // Predicated region
      $region61: #{two_branch_forward.1} parent=59 // pred_check
        %p2712 = pneg %p186
      $region62: #{two_branch_forward.1} parent=59 // pred_check_branch
        %2714 = sbr.rel (%p2712) target = $region64
      $region63: #{two_branch_forward.1} parent=59 // pred_region
        %p2715 = scmp.lt.s32.totalorder %s24, 1
        %s2716 = scalar_select %p2715, %s24, 1
        %s2717 = smul.addr %s2716, 2
        %s2718 = scalar_lea.vmem %s5, %s2717
      $region64: #{two_branch_forward.1} parent=59 // pred_fallthru
        _
      // Predicated region
      $region65: #{two_branch_forward.1} parent=59 // pred_check
        %p2719 = pneg %p212
      $region66: #{two_branch_forward.1} parent=59 // pred_check_branch
        %2721 = sbr.rel (%p2719) target = $region68
      $region67: #{two_branch_forward.1} parent=59 // pred_region
        %p2722 = scmp.lt.s32.totalorder %s24, 1
        %s2723 = scalar_select %p2722, %s24, 1
        %s2724 = smul.addr %s2723, 2
        %s2725 = scalar_lea.vmem %s6, %s2724
      $region68: #{two_branch_forward.1} parent=59 // pred_fallthru
        _
    $region60: #{two_branch_forward.1} parent=5 // pred_fallthru
      _
  $region6: #{two_branch_forward.1} parent=0 // loop_footer
    %s17 = sadd.s32 1, %s13
  $region7: #{two_branch_forward.1} parent=0 // loop_footer_branch
    %12 = sbr.rel target = $region3
  $region8: #{two_branch_forward.1} parent=0 // loop_exit
    _

</llo_original>
